<compile_context>
chip_gen: v6e
topology: v6e:2x2x1
jax: 0.10.0
libtpu: 0.0.40
codegen_flags: <defaults>
</compile_context>

<pallas_src>
import functools

import jax
import jax.numpy as jnp
from jax.experimental import pallas as pl
from jax.experimental.pallas import tpu as pltpu

_MIB = 1024 * 1024


def _layernorm(x, gamma, beta, eps=1e-5):
    mean = jnp.mean(x, axis=-1, keepdims=True)
    var = jnp.mean((x - mean) ** 2, axis=-1, keepdims=True)
    return (x - mean) * jax.lax.rsqrt(var + eps) * gamma + beta


# ----------------------------------------------------------------------------
# Fused encoder kernel: grid = (batch_blocks, num_layers), layer axis innermost.
# ----------------------------------------------------------------------------
def _encoder_kernel(x_ref, bias_ref,
                    wv_ref, wk_ref, wo_ref, bo_ref,
                    g1_ref, b1_ref, w1_ref, bf1_ref, w2_ref, bf2_ref,
                    g2_ref, b2_ref,
                    o_ref, act_ref,
                    *, heads, head_dim, embed_size, seq_len, batch_block):
    l = pl.program_id(1)
    E, hd, S, nb = embed_size, head_dim, seq_len, batch_block
    rows = nb * S

    # Load this batch block's activation into the layer-resident VMEM scratch.
    @pl.when(l == 0)
    def _():
        act_ref[...] = x_ref[...]

    x = act_ref[...]                                     # (rows, E) f32
    x_bf = x.astype(jnp.bfloat16)

    # --- Self-attention ------------------------------------------------------
    # Value / key projections over all tokens at once (mask-independent).
    v = jnp.dot(x_bf, wv_ref[...], preferred_element_type=jnp.float32)
    k = jnp.dot(x_bf, wk_ref[...], preferred_element_type=jnp.float32)
    # Reference quirk: projected queries are discarded; raw (pre-scaled) query
    # is used.  Pre-scaling q keeps the S^2 energy tensor free of a scale pass.
    scale = 1.0 / (E ** 0.5)
    q = x * scale

    def to_heads(t):   # (rows, E) -> (heads*nb, S, hd), head-major batch
        parts = [t[:, h * hd:(h + 1) * hd].reshape(nb, S, hd)
                 for h in range(heads)]
        return jnp.stack(parts, axis=0).reshape(heads * nb, S, hd)

    qh = to_heads(q).astype(jnp.bfloat16)
    kh = to_heads(k).astype(jnp.bfloat16)
    vh = to_heads(v).astype(jnp.bfloat16)

    energy = jnp.einsum("bqd,bkd->bqk", qh, kh,
                        preferred_element_type=jnp.float32)   # (heads*nb, S, S)
    # Mask bias ({0,-1e20}) was precomputed in the wrapper; apply it with a lazy
    # 4-D broadcast over the heads axis (no compare/select, no tiled copy).
    energy = (energy.reshape(heads, nb, S, S)
              + bias_ref[...].reshape(1, nb, 1, S)).reshape(heads * nb, S, S)
    energy = energy - jnp.max(energy, axis=-1, keepdims=True)
    p = jnp.exp(energy)                                   # unnormalized probs
    l_sum = jnp.sum(p, axis=-1, keepdims=True)            # (heads*nb, S, 1)

    ctx = jnp.einsum("bqk,bkd->bqd", p.astype(jnp.bfloat16), vh,
                     preferred_element_type=jnp.float32)      # (heads*nb, S, hd)
    # Deferred softmax normalization: S*hd-sized pass instead of S^2-sized.
    ctx = ctx * pl.reciprocal(l_sum, approx=True)
    ctx = ctx.reshape(heads, nb, S, hd)
    ctx = jnp.concatenate([ctx[h] for h in range(heads)], axis=-1)   # (nb, S, E)
    ctx = ctx.reshape(rows, E)
    # fc_out applied once against the full concatenated head output.
    attn = jnp.dot(ctx.astype(jnp.bfloat16), wo_ref[...],
                   preferred_element_type=jnp.float32) + bo_ref[...]

    # --- Residual + LN1, FFN, residual + LN2 (dropout == identity) ------------
    x1 = _layernorm(attn + x, g1_ref[...], b1_ref[...])
    hid = jnp.dot(x1.astype(jnp.bfloat16), w1_ref[...],
                  preferred_element_type=jnp.float32) + bf1_ref[...]
    hid = jnp.maximum(hid, 0.0)
    ff = jnp.dot(hid.astype(jnp.bfloat16), w2_ref[...],
                 preferred_element_type=jnp.float32) + bf2_ref[...]
    x2 = _layernorm(ff + x1, g2_ref[...], b2_ref[...])

    act_ref[...] = x2                                    # carry to next layer

    @pl.when(l == pl.num_programs(1) - 1)
    def _():
        o_ref[...] = x2.astype(o_ref.dtype)


# ----------------------------------------------------------------------------
# Generation-aware block / VMEM budgeting
# ----------------------------------------------------------------------------
def _tpu_vmem_and_cores():
    """Per-TensorCore VMEM capacity and #TensorCores per chip (best effort)."""
    vmem = 128 * _MIB
    num_tc = None
    try:
        info = pltpu.get_tpu_info()
        for name in ("vmem_capacity_bytes", "vmem_size_bytes", "vmem_bytes"):
            val = getattr(info, name, None)
            if val:
                vmem = int(val)
                break
        for name in ("num_tensorcores", "tensorcores_per_chip", "num_cores"):
            val = getattr(info, name, None)
            if val:
                num_tc = int(val)
                break
    except Exception:
        pass
    if num_tc is None:
        # v7x exposes 64 MiB VMEM per TC and has 2 TCs; v5e/v6e: 128 MiB, 1 TC.
        num_tc = 2 if vmem <= 64 * _MIB else 1
    return vmem, num_tc


def _vmem_bytes_estimate(nb, S, E, H, heads):
    """Rough peak-VMEM estimate for one grid step with batch block `nb`."""
    rows = nb * S
    weights = 2 * (2 * (3 * E * E + 2 * E * H) + 4 * (6 * E + H))  # dbl-buffered
    act = 4 * rows * E                                   # resident scratch
    io = 2 * 2 * (4 * rows * E) + 2 * 4 * nb * S         # in/out blocks + bias
    inter = (4 * 4 * rows * E                            # x/ctx/attn/ff (f32)
             + 4 * 2 * rows * E                          # bf16 x/q/k/v head views
             + 2 * 4 * heads * nb * S * S                # energy + p (f32)
             + 4 * rows * H + 2 * rows * H)              # hid f32 + bf16
    return weights + act + io + inter


def _pick_batch_block(N, S, E, H, heads, vmem_cap, num_tc):
    """Batch block size: fewest blocks that fit the VMEM budget on single-TC
    chips; exactly one block per TensorCore on multi-TC (v7x) chips."""
    budget = int(vmem_cap * 0.7)           # headroom for compiler scratch
    cands = [nb for nb in range(1, N + 1)
             if N % nb == 0 and ((nb * S) % 8 == 0 or nb == N)]
    fitting = [nb for nb in cands
               if _vmem_bytes_estimate(nb, S, E, H, heads) <= budget]
    if not fitting:
        # TODO(synk): for very large E/H/S on v7x (64 MiB VMEM), tile the FFN
        # over H and loop attention over heads instead of shrinking the block.
        return min(cands)
    if num_tc >= 2:
        pref = [nb for nb in fitting if N // nb == num_tc]
        if pref:
            return max(pref)
    return max(fitting)                    # fewest blocks => least weight DMA


# ----------------------------------------------------------------------------
# Wrapper
# ----------------------------------------------------------------------------
def encoder_forward(tokens, mask, params, heads, *, batch_block=None):
    """tokens: (N, S) int32; mask: (N, 1, S) float (0 => masked)."""
    N, S = tokens.shape
    E = params["word_emb"].shape[1]
    L, _, H = params["w1"].shape

    # Embedding lookup (gather) is plain-JAX glue; dropout == identity.
    positions = jnp.arange(S, dtype=jnp.int32)
    x = params["word_emb"][tokens] + params["pos_emb"][positions][None, :, :]
    x2d = x.reshape(N * S, E).astype(jnp.float32)        # flattened tokens

    # Additive mask bias precomputed once in the wrapper (hoisted out of the
    # per-layer kernel body; kernel only does a broadcast add).
    bias = jnp.where(mask.astype(jnp.float32) == 0.0,
                     jnp.float32(-1e20), jnp.float32(0.0))      # (N, 1, S)

    vmem_cap, num_tc = _tpu_vmem_and_cores()
    nb = batch_block if batch_block is not None else _pick_batch_block(
        N, S, E, H, heads, vmem_cap, num_tc)
    assert N % nb == 0
    num_bb = N // nb

    est = _vmem_bytes_estimate(nb, S, E, H, heads)
    vmem_limit = max(32 * _MIB, min(int(vmem_cap * 0.9), est + 16 * _MIB))

    kernel = functools.partial(
        _encoder_kernel, heads=heads, head_dim=E // heads, embed_size=E,
        seq_len=S, batch_block=nb)

    def wspec(*shape):          # per-layer stacked weight, leading dim squeezed
        zeros = (0,) * len(shape)
        return pl.BlockSpec((None,) + shape, lambda b, l: (l,) + zeros)

    grid_spec = pltpu.PrefetchScalarGridSpec(
        num_scalar_prefetch=0,
        grid=(num_bb, L),                                 # layer axis innermost
        in_specs=[
            pl.BlockSpec((nb * S, E), lambda b, l: (b, 0)),     # activations
            pl.BlockSpec((nb, 1, S), lambda b, l: (b, 0, 0)),   # mask bias
            wspec(E, E), wspec(E, E), wspec(E, E), wspec(1, E),  # wv wk wo bo
            wspec(1, E), wspec(1, E),                            # norm1 g,b
            wspec(E, H), wspec(1, H), wspec(H, E), wspec(1, E),  # ffn
            wspec(1, E), wspec(1, E),                            # norm2 g,b
        ],
        out_specs=pl.BlockSpec((nb * S, E), lambda b, l: (b, 0)),
        scratch_shapes=[pltpu.VMEM((nb * S, E), jnp.float32)],   # resident act
    )
    out2d = pl.pallas_call(
        kernel,
        out_shape=jax.ShapeDtypeStruct((N * S, E), jnp.float32),
        grid_spec=grid_spec,
        compiler_params=pltpu.CompilerParams(
            dimension_semantics=("parallel", "arbitrary"),
            vmem_limit_bytes=vmem_limit),
    )(x2d, bias,
      params["wv"], params["wk"], params["wo"], params["bo"],
      params["g1"], params["b1"], params["w1"], params["bf1"],
      params["w2"], params["bf2"], params["g2"], params["b2"])
    return out2d.reshape(N, S, E)


# ----------------------------------------------------------------------------
# Deterministic parameter initialization (shapes from the module __init__).
# Per-layer weights are stacked along a leading "layer" axis for the fused call.
# ----------------------------------------------------------------------------
def init_params(key, vocab, max_len, E, num_layers, forward_expansion):
    H = forward_expansion * E
    L = num_layers
    ks = jax.random.split(key, 10)
    nrm = lambda k, shape, s=0.1: s * jax.random.normal(k, shape, jnp.float32)
    bf16 = lambda a: a.astype(jnp.bfloat16)
    # Wq of SelfAttention is dead code in the reference forward -> omitted.
    return {
        "word_emb": nrm(ks[0], (vocab, E), 0.02),
        "pos_emb": nrm(ks[1], (max_len, E), 0.02),
        # Matmul weights stored in bf16 (halves weight DMA, MXU-native on
        # v6e/v7x); biases and LayerNorm params stay f32 (f32 elementwise math).
        "wv": bf16(nrm(ks[2], (L, E, E))),
        "wk": bf16(nrm(ks[3], (L, E, E))),
        "wo": bf16(nrm(ks[4], (L, E, E))),
        "bo": nrm(ks[5], (L, 1, E)),
        "g1": jnp.ones((L, 1, E), jnp.float32),
        "b1": jnp.zeros((L, 1, E), jnp.float32),
        "w1": bf16(nrm(ks[6], (L, E, H))),
        "bf1": nrm(ks[7], (L, 1, H)),
        "w2": bf16(nrm(ks[8], (L, H, E))),
        "bf2": nrm(ks[9], (L, 1, E)),
        "g2": jnp.ones((L, 1, E), jnp.float32),
        "b2": jnp.zeros((L, 1, E), jnp.float32),
    }


# ----------------------------------------------------------------------------
# Pure-JAX reference (mirrors the PyTorch einsum/reshape formulation exactly,
# with the same precision policy: bf16 matmul operands, f32 accumulation,
# f32 softmax / LayerNorm / residuals).
# ----------------------------------------------------------------------------
def _ref_block(x, mask, w, heads):
    N, S, E = x.shape
    hd = E // heads
    bf = jnp.bfloat16

    xb = x.astype(bf)
    v = jnp.einsum("nse,ef->nsf", xb, w["wv"], preferred_element_type=jnp.float32)
    k = jnp.einsum("nse,ef->nsf", xb, w["wk"], preferred_element_type=jnp.float32)
    v = v.reshape(N, S, heads, hd)
    k = k.reshape(N, S, heads, hd)
    q = x.reshape(N, S, heads, hd)     # raw query (PyTorch behavior, Wq unused)

    energy = jnp.einsum("nqhd,nkhd->nhqk", q.astype(bf), k.astype(bf),
                        preferred_element_type=jnp.float32)
    energy = jnp.where(mask[:, :, None, :] == 0, -1e20, energy)
    attn = jax.nn.softmax(energy / (E ** 0.5), axis=3)
    out = jnp.einsum("nhqk,nkhd->nqhd", attn.astype(bf), v.astype(bf),
                     preferred_element_type=jnp.float32).reshape(N, S, E)
    out = jnp.einsum("nse,ef->nsf", out.astype(bf), w["wo"],
                     preferred_element_type=jnp.float32) + w["bo"]
    x1 = _layernorm(out + x, w["g1"], w["b1"])
    hid = jnp.einsum("nse,eh->nsh", x1.astype(bf), w["w1"],
                     preferred_element_type=jnp.float32) + w["bf1"]
    hid = jnp.maximum(hid, 0.0)
    ff = jnp.einsum("nsh,he->nse", hid.astype(bf), w["w2"],
                    preferred_element_type=jnp.float32) + w["bf2"]
    return _layernorm(ff + x1, w["g2"], w["b2"])


def _ref_encoder(tokens, mask, params, heads):
    N, S = tokens.shape
    positions = jnp.arange(S, dtype=jnp.int32)
    out = params["word_emb"][tokens] + params["pos_emb"][positions][None, :, :]
    names = ("wv", "wk", "wo", "bo", "g1", "b1",
             "w1", "bf1", "w2", "bf2", "g2", "b2")
    for l in range(params["wv"].shape[0]):
        lw = {n: params[n][l] for n in names}
        out = _ref_block(out, mask, lw, heads)
    return out


if __name__ == "__main__":
    # Small shapes consistent with the module.
    N, S = 2, 8
    E, heads = 32, 4
    vocab, max_len = 50, 16
    num_layers, forward_expansion = 2, 4

    key = jax.random.PRNGKey(0)
    kp, kt = jax.random.split(key)
    params = init_params(kp, vocab, max_len, E, num_layers, forward_expansion)

    tokens = jax.random.randint(kt, (N, S), 0, vocab, dtype=jnp.int32)
    # Padding mask: second sequence has only 5 valid tokens (exercises masking).
    lengths = jnp.array([S, 5], dtype=jnp.int32)
    mask = (jnp.arange(S)[None, :] < lengths[:, None]).astype(jnp.float32)[:, None, :]

    out = encoder_forward(tokens, mask, params, heads)
    out = jax.block_until_ready(out)

    ref = _ref_encoder(tokens, mask, params, heads)
    assert out.shape == (N, S, E) and out.dtype == jnp.float32
    # Kernel uses bf16 MXU operands, a pre-scaled q, deferred softmax
    # normalization and pl.reciprocal(approx=True), so allow a modest tolerance
    # vs. the same-precision-policy JAX reference.
    assert jnp.allclose(out, ref, rtol=2e-2, atol=2e-2), "mismatch vs JAX reference"

    print("KERNEL_OK")
</pallas_src>

<mosaic_0001>
module attributes {stable_mosaic.version = 11 : i64} {
  func.func @_encoder_kernel(%arg0: i32, %arg1: i32, %arg2: memref<16x32xf32, #tpu.memory_space<vmem>>, %arg3: memref<2x1x8xf32, #tpu.memory_space<vmem>>, %arg4: memref<1x32x32xbf16, #tpu.memory_space<vmem>>, %arg5: memref<1x32x32xbf16, #tpu.memory_space<vmem>>, %arg6: memref<1x32x32xbf16, #tpu.memory_space<vmem>>, %arg7: memref<1x1x32xf32, #tpu.memory_space<vmem>>, %arg8: memref<1x1x32xf32, #tpu.memory_space<vmem>>, %arg9: memref<1x1x32xf32, #tpu.memory_space<vmem>>, %arg10: memref<1x32x128xbf16, #tpu.memory_space<vmem>>, %arg11: memref<1x1x128xf32, #tpu.memory_space<vmem>>, %arg12: memref<1x128x32xbf16, #tpu.memory_space<vmem>>, %arg13: memref<1x1x32xf32, #tpu.memory_space<vmem>>, %arg14: memref<1x1x32xf32, #tpu.memory_space<vmem>>, %arg15: memref<1x1x32xf32, #tpu.memory_space<vmem>>, %arg16: memref<16x32xf32, #tpu.memory_space<vmem>>, %arg17: memref<16x32xf32, #tpu.memory_space<vmem>>) attributes {dimension_semantics = [#tpu.dimension_semantics<parallel>, #tpu.dimension_semantics<arbitrary>], iteration_bounds = array<i64: 1, 2>, scalar_prefetch = 0 : i64, scratch_operands = 1 : i64, tpu.core_type = #tpu.core_type<tc>, window_params = [{transform_indices = @transform_0, window_bounds = array<i64: 16, 32>}, {transform_indices = @transform_1, window_bounds = array<i64: 2, 1, 8>}, {transform_indices = @transform_2, window_bounds = array<i64: 1, 32, 32>}, {transform_indices = @transform_3, window_bounds = array<i64: 1, 32, 32>}, {transform_indices = @transform_4, window_bounds = array<i64: 1, 32, 32>}, {transform_indices = @transform_5, window_bounds = array<i64: 1, 1, 32>}, {transform_indices = @transform_6, window_bounds = array<i64: 1, 1, 32>}, {transform_indices = @transform_7, window_bounds = array<i64: 1, 1, 32>}, {transform_indices = @transform_8, window_bounds = array<i64: 1, 32, 128>}, {transform_indices = @transform_9, window_bounds = array<i64: 1, 1, 128>}, {transform_indices = @transform_10, window_bounds = array<i64: 1, 128, 32>}, {transform_indices = @transform_11, window_bounds = array<i64: 1, 1, 32>}, {transform_indices = @transform_12, window_bounds = array<i64: 1, 1, 32>}, {transform_indices = @transform_13, window_bounds = array<i64: 1, 1, 32>}, {transform_indices = @transform_14, window_bounds = array<i64: 16, 32>}]} {
    %c0_i32 = arith.constant 0 : i32
    %0 = arith.cmpi eq, %arg1, %c0_i32 : i32
    %1 = arith.extui %0 : i1 to i32
    %c0_i32_0 = arith.constant 0 : i32
    %2 = arith.cmpi ne, %1, %c0_i32_0 : i32
    scf.if %2 {
      %c0_64 = arith.constant 0 : index
      %c0_65 = arith.constant 0 : index
      %172 = vector.load %arg2[%c0_64, %c0_65] : memref<16x32xf32, #tpu.memory_space<vmem>>, vector<16x32xf32>
      %c0_66 = arith.constant 0 : index
      %c0_67 = arith.constant 0 : index
      %173 = vector.load %arg17[%c0_66, %c0_67] : memref<16x32xf32, #tpu.memory_space<vmem>>, vector<16x32xf32>
      tpu.vector_store %arg17[%c0_66, %c0_67], %172 {strides = array<i32>} : memref<16x32xf32, #tpu.memory_space<vmem>>, vector<16x32xf32>,
    } else {
    }
    %c0 = arith.constant 0 : index
    %c0_1 = arith.constant 0 : index
    %3 = vector.load %arg17[%c0, %c0_1] : memref<16x32xf32, #tpu.memory_space<vmem>>, vector<16x32xf32>
    %4 = arith.truncf %3 : vector<16x32xf32> to vector<16x32xbf16>
    %c0_2 = arith.constant 0 : index
    %c0_3 = arith.constant 0 : index
    %c0_4 = arith.constant 0 : index
    %5 = vector.load %arg4[%c0_2, %c0_3, %c0_4] : memref<1x32x32xbf16, #tpu.memory_space<vmem>>, vector<1x32x32xbf16>
    %6 = vector.shape_cast %5 : vector<1x32x32xbf16> to vector<32x32xbf16>
    %cst = arith.constant dense<0.000000e+00> : vector<16x32xf32>
    %7 = tpu.matmul %4, %6, %cst {dimension_numbers = #tpu.dot_dimension_numbers<[1], [0], [0], [1], [0, 0, 1, 1], [], []>} : vector<16x32xbf16>, vector<32x32xbf16>, vector<16x32xf32> -> vector<16x32xf32>
    %c0_5 = arith.constant 0 : index
    %c0_6 = arith.constant 0 : index
    %c0_7 = arith.constant 0 : index
    %8 = vector.load %arg5[%c0_5, %c0_6, %c0_7] : memref<1x32x32xbf16, #tpu.memory_space<vmem>>, vector<1x32x32xbf16>
    %9 = vector.shape_cast %8 : vector<1x32x32xbf16> to vector<32x32xbf16>
    %cst_8 = arith.constant dense<0.000000e+00> : vector<16x32xf32>
    %10 = tpu.matmul %4, %9, %cst_8 {dimension_numbers = #tpu.dot_dimension_numbers<[1], [0], [0], [1], [0, 0, 1, 1], [], []>} : vector<16x32xbf16>, vector<32x32xbf16>, vector<16x32xf32> -> vector<16x32xf32>
    %cst_9 = arith.constant 0.176776692 : f32
    %11 = vector.broadcast %cst_9 : f32 to vector<16x32xf32>
    %12 = arith.mulf %3, %11 : vector<16x32xf32>
    %13 = vector.extract_strided_slice %12 {offsets = [0, 0], sizes = [16, 8], strides = [1, 1]} : vector<16x32xf32> to vector<16x8xf32>
    %14 = vector.shape_cast %13 : vector<16x8xf32> to vector<2x8x8xf32>
    %15 = vector.extract_strided_slice %12 {offsets = [0, 8], sizes = [16, 8], strides = [1, 1]} : vector<16x32xf32> to vector<16x8xf32>
    %16 = vector.shape_cast %15 : vector<16x8xf32> to vector<2x8x8xf32>
    %17 = vector.extract_strided_slice %12 {offsets = [0, 16], sizes = [16, 8], strides = [1, 1]} : vector<16x32xf32> to vector<16x8xf32>
    %18 = vector.shape_cast %17 : vector<16x8xf32> to vector<2x8x8xf32>
    %19 = vector.extract_strided_slice %12 {offsets = [0, 24], sizes = [16, 8], strides = [1, 1]} : vector<16x32xf32> to vector<16x8xf32>
    %20 = vector.shape_cast %19 : vector<16x8xf32> to vector<2x8x8xf32>
    %21 = vector.shape_cast %14 : vector<2x8x8xf32> to vector<1x2x8x8xf32>
    %22 = vector.shape_cast %16 : vector<2x8x8xf32> to vector<1x2x8x8xf32>
    %23 = vector.shape_cast %18 : vector<2x8x8xf32> to vector<1x2x8x8xf32>
    %24 = vector.shape_cast %20 : vector<2x8x8xf32> to vector<1x2x8x8xf32>
    %25 = tpu.concatenate %21, %22, %23, %24 in 0 : vector<1x2x8x8xf32>, vector<1x2x8x8xf32>, vector<1x2x8x8xf32>, vector<1x2x8x8xf32> -> vector<4x2x8x8xf32>
    %26 = vector.shape_cast %25 : vector<4x2x8x8xf32> to vector<8x8x8xf32>
    %27 = arith.truncf %26 : vector<8x8x8xf32> to vector<8x8x8xbf16>
    %28 = vector.extract_strided_slice %10 {offsets = [0, 0], sizes = [16, 8], strides = [1, 1]} : vector<16x32xf32> to vector<16x8xf32>
    %29 = vector.shape_cast %28 : vector<16x8xf32> to vector<2x8x8xf32>
    %30 = vector.extract_strided_slice %10 {offsets = [0, 8], sizes = [16, 8], strides = [1, 1]} : vector<16x32xf32> to vector<16x8xf32>
    %31 = vector.shape_cast %30 : vector<16x8xf32> to vector<2x8x8xf32>
    %32 = vector.extract_strided_slice %10 {offsets = [0, 16], sizes = [16, 8], strides = [1, 1]} : vector<16x32xf32> to vector<16x8xf32>
    %33 = vector.shape_cast %32 : vector<16x8xf32> to vector<2x8x8xf32>
    %34 = vector.extract_strided_slice %10 {offsets = [0, 24], sizes = [16, 8], strides = [1, 1]} : vector<16x32xf32> to vector<16x8xf32>
    %35 = vector.shape_cast %34 : vector<16x8xf32> to vector<2x8x8xf32>
    %36 = vector.shape_cast %29 : vector<2x8x8xf32> to vector<1x2x8x8xf32>
    %37 = vector.shape_cast %31 : vector<2x8x8xf32> to vector<1x2x8x8xf32>
    %38 = vector.shape_cast %33 : vector<2x8x8xf32> to vector<1x2x8x8xf32>
    %39 = vector.shape_cast %35 : vector<2x8x8xf32> to vector<1x2x8x8xf32>
    %40 = tpu.concatenate %36, %37, %38, %39 in 0 : vector<1x2x8x8xf32>, vector<1x2x8x8xf32>, vector<1x2x8x8xf32>, vector<1x2x8x8xf32> -> vector<4x2x8x8xf32>
    %41 = vector.shape_cast %40 : vector<4x2x8x8xf32> to vector<8x8x8xf32>
    %42 = arith.truncf %41 : vector<8x8x8xf32> to vector<8x8x8xbf16>
    %43 = vector.extract_strided_slice %7 {offsets = [0, 0], sizes = [16, 8], strides = [1, 1]} : vector<16x32xf32> to vector<16x8xf32>
    %44 = vector.shape_cast %43 : vector<16x8xf32> to vector<2x8x8xf32>
    %45 = vector.extract_strided_slice %7 {offsets = [0, 8], sizes = [16, 8], strides = [1, 1]} : vector<16x32xf32> to vector<16x8xf32>
    %46 = vector.shape_cast %45 : vector<16x8xf32> to vector<2x8x8xf32>
    %47 = vector.extract_strided_slice %7 {offsets = [0, 16], sizes = [16, 8], strides = [1, 1]} : vector<16x32xf32> to vector<16x8xf32>
    %48 = vector.shape_cast %47 : vector<16x8xf32> to vector<2x8x8xf32>
    %49 = vector.extract_strided_slice %7 {offsets = [0, 24], sizes = [16, 8], strides = [1, 1]} : vector<16x32xf32> to vector<16x8xf32>
    %50 = vector.shape_cast %49 : vector<16x8xf32> to vector<2x8x8xf32>
    %51 = vector.shape_cast %44 : vector<2x8x8xf32> to vector<1x2x8x8xf32>
    %52 = vector.shape_cast %46 : vector<2x8x8xf32> to vector<1x2x8x8xf32>
    %53 = vector.shape_cast %48 : vector<2x8x8xf32> to vector<1x2x8x8xf32>
    %54 = vector.shape_cast %50 : vector<2x8x8xf32> to vector<1x2x8x8xf32>
    %55 = tpu.concatenate %51, %52, %53, %54 in 0 : vector<1x2x8x8xf32>, vector<1x2x8x8xf32>, vector<1x2x8x8xf32>, vector<1x2x8x8xf32> -> vector<4x2x8x8xf32>
    %56 = vector.shape_cast %55 : vector<4x2x8x8xf32> to vector<8x8x8xf32>
    %57 = arith.truncf %56 : vector<8x8x8xf32> to vector<8x8x8xbf16>
    "tpu.trace_start"() <{level = 10 : i32, message = "bqd,bkd->bqk"}> : () -> ()
    %cst_10 = arith.constant dense<0.000000e+00> : vector<8x8x8xf32>
    %58 = tpu.matmul %27, %42, %cst_10 {dimension_numbers = #tpu.dot_dimension_numbers<[2], [2], [1], [1], [0, 0, 0, 1, 1, 1], [0], [0]>} : vector<8x8x8xbf16>, vector<8x8x8xbf16>, vector<8x8x8xf32> -> vector<8x8x8xf32>
    "tpu.trace_stop"() : () -> ()
    %59 = vector.shape_cast %58 : vector<8x8x8xf32> to vector<4x2x8x8xf32>
    %c0_11 = arith.constant 0 : index
    %c0_12 = arith.constant 0 : index
    %c0_13 = arith.constant 0 : index
    %60 = vector.load %arg3[%c0_11, %c0_12, %c0_13] : memref<2x1x8xf32, #tpu.memory_space<vmem>>, vector<2x1x8xf32>
    %61 = vector.shape_cast %60 : vector<2x1x8xf32> to vector<1x2x1x8xf32>
    %62 = vector.broadcast %61 : vector<1x2x1x8xf32> to vector<4x2x8x8xf32>
    %63 = arith.addf %59, %62 : vector<4x2x8x8xf32>
    %64 = vector.shape_cast %63 : vector<4x2x8x8xf32> to vector<8x8x8xf32>
    %cst_14 = arith.constant dense<0xFF800000> : vector<8x8xf32>
    %65 = vector.multi_reduction <maximumf>, %64, %cst_14 [2] : vector<8x8x8xf32> to vector<8x8xf32>
    %66 = vector.shape_cast %65 : vector<8x8xf32> to vector<8x8x1xf32>
    %67 = vector.broadcast %66 : vector<8x8x1xf32> to vector<8x8x8xf32>
    %68 = arith.subf %64, %67 : vector<8x8x8xf32>
    %69 = math.exp %68 : vector<8x8x8xf32>
    %cst_15 = arith.constant dense<0.000000e+00> : vector<8x8xf32>
    %70 = vector.multi_reduction <add>, %69, %cst_15 [2] : vector<8x8x8xf32> to vector<8x8xf32>
    %71 = vector.shape_cast %70 : vector<8x8xf32> to vector<8x8x1xf32>
    %72 = arith.truncf %69 : vector<8x8x8xf32> to vector<8x8x8xbf16>
    "tpu.trace_start"() <{level = 10 : i32, message = "bqk,bkd->bqd"}> : () -> ()
    %cst_16 = arith.constant dense<0.000000e+00> : vector<8x8x8xf32>
    %73 = tpu.matmul %72, %57, %cst_16 {dimension_numbers = #tpu.dot_dimension_numbers<[2], [1], [1], [2], [0, 0, 0, 1, 1, 2], [0], [0]>} : vector<8x8x8xbf16>, vector<8x8x8xbf16>, vector<8x8x8xf32> -> vector<8x8x8xf32>
    "tpu.trace_stop"() : () -> ()
    %74 = tpu.reciprocal %71 {approx = true} : vector<8x8x1xf32> -> vector<8x8x1xf32>
    %75 = vector.broadcast %74 : vector<8x8x1xf32> to vector<8x8x8xf32>
    %76 = arith.mulf %73, %75 : vector<8x8x8xf32>
    %77 = vector.shape_cast %76 : vector<8x8x8xf32> to vector<4x2x8x8xf32>
    %78 = vector.extract_strided_slice %77 {offsets = [0, 0, 0, 0], sizes = [1, 2, 8, 8], strides = [1, 1, 1, 1]} : vector<4x2x8x8xf32> to vector<1x2x8x8xf32>
    %79 = vector.shape_cast %78 : vector<1x2x8x8xf32> to vector<2x8x8xf32>
    %80 = vector.extract_strided_slice %77 {offsets = [1, 0, 0, 0], sizes = [1, 2, 8, 8], strides = [1, 1, 1, 1]} : vector<4x2x8x8xf32> to vector<1x2x8x8xf32>
    %81 = vector.shape_cast %80 : vector<1x2x8x8xf32> to vector<2x8x8xf32>
    %82 = vector.extract_strided_slice %77 {offsets = [2, 0, 0, 0], sizes = [1, 2, 8, 8], strides = [1, 1, 1, 1]} : vector<4x2x8x8xf32> to vector<1x2x8x8xf32>
    %83 = vector.shape_cast %82 : vector<1x2x8x8xf32> to vector<2x8x8xf32>
    %84 = vector.extract_strided_slice %77 {offsets = [3, 0, 0, 0], sizes = [1, 2, 8, 8], strides = [1, 1, 1, 1]} : vector<4x2x8x8xf32> to vector<1x2x8x8xf32>
    %85 = vector.shape_cast %84 : vector<1x2x8x8xf32> to vector<2x8x8xf32>
    %86 = tpu.concatenate %79, %81, %83, %85 in 2 : vector<2x8x8xf32>, vector<2x8x8xf32>, vector<2x8x8xf32>, vector<2x8x8xf32> -> vector<2x8x32xf32>
    %87 = vector.shape_cast %86 : vector<2x8x32xf32> to vector<16x32xf32>
    %88 = arith.truncf %87 : vector<16x32xf32> to vector<16x32xbf16>
    %c0_17 = arith.constant 0 : index
    %c0_18 = arith.constant 0 : index
    %c0_19 = arith.constant 0 : index
    %89 = vector.load %arg6[%c0_17, %c0_18, %c0_19] : memref<1x32x32xbf16, #tpu.memory_space<vmem>>, vector<1x32x32xbf16>
    %90 = vector.shape_cast %89 : vector<1x32x32xbf16> to vector<32x32xbf16>
    %cst_20 = arith.constant dense<0.000000e+00> : vector<16x32xf32>
    %91 = tpu.matmul %88, %90, %cst_20 {dimension_numbers = #tpu.dot_dimension_numbers<[1], [0], [0], [1], [0, 0, 1, 1], [], []>} : vector<16x32xbf16>, vector<32x32xbf16>, vector<16x32xf32> -> vector<16x32xf32>
    %c0_21 = arith.constant 0 : index
    %c0_22 = arith.constant 0 : index
    %c0_23 = arith.constant 0 : index
    %92 = vector.load %arg7[%c0_21, %c0_22, %c0_23] : memref<1x1x32xf32, #tpu.memory_space<vmem>>, vector<1x1x32xf32>
    %93 = vector.shape_cast %92 : vector<1x1x32xf32> to vector<1x32xf32>
    %94 = vector.broadcast %93 : vector<1x32xf32> to vector<16x32xf32>
    %95 = arith.addf %91, %94 : vector<16x32xf32>
    %96 = arith.addf %95, %3 : vector<16x32xf32>
    %c0_24 = arith.constant 0 : index
    %c0_25 = arith.constant 0 : index
    %c0_26 = arith.constant 0 : index
    %97 = vector.load %arg8[%c0_24, %c0_25, %c0_26] : memref<1x1x32xf32, #tpu.memory_space<vmem>>, vector<1x1x32xf32>
    %98 = vector.shape_cast %97 : vector<1x1x32xf32> to vector<1x32xf32>
    %c0_27 = arith.constant 0 : index
    %c0_28 = arith.constant 0 : index
    %c0_29 = arith.constant 0 : index
    %99 = vector.load %arg9[%c0_27, %c0_28, %c0_29] : memref<1x1x32xf32, #tpu.memory_space<vmem>>, vector<1x1x32xf32>
    %100 = vector.shape_cast %99 : vector<1x1x32xf32> to vector<1x32xf32>
    %cst_30 = arith.constant dense<0.000000e+00> : vector<16xf32>
    %101 = vector.multi_reduction <add>, %96, %cst_30 [1] : vector<16x32xf32> to vector<16xf32>
    %102 = vector.shape_cast %101 : vector<16xf32> to vector<16x1xf32>
    %cst_31 = arith.constant 3.200000e+01 : f32
    %103 = vector.broadcast %cst_31 : f32 to vector<16x1xf32>
    %104 = arith.divf %102, %103 : vector<16x1xf32>
    %105 = vector.broadcast %104 : vector<16x1xf32> to vector<16x32xf32>
    %106 = arith.subf %96, %105 : vector<16x32xf32>
    %107 = arith.mulf %106, %106 : vector<16x32xf32>
    %cst_32 = arith.constant dense<0.000000e+00> : vector<16xf32>
    %108 = vector.multi_reduction <add>, %107, %cst_32 [1] : vector<16x32xf32> to vector<16xf32>
    %109 = vector.shape_cast %108 : vector<16xf32> to vector<16x1xf32>
    %cst_33 = arith.constant 3.200000e+01 : f32
    %110 = vector.broadcast %cst_33 : f32 to vector<16x1xf32>
    %111 = arith.divf %109, %110 : vector<16x1xf32>
    %112 = vector.broadcast %104 : vector<16x1xf32> to vector<16x32xf32>
    %113 = arith.subf %96, %112 : vector<16x32xf32>
    %cst_34 = arith.constant 9.99999974E-6 : f32
    %114 = vector.broadcast %cst_34 : f32 to vector<16x1xf32>
    %115 = arith.addf %111, %114 : vector<16x1xf32>
    %116 = math.rsqrt %115 : vector<16x1xf32>
    %117 = vector.broadcast %116 : vector<16x1xf32> to vector<16x32xf32>
    %118 = arith.mulf %113, %117 : vector<16x32xf32>
    %119 = vector.broadcast %98 : vector<1x32xf32> to vector<16x32xf32>
    %120 = arith.mulf %118, %119 : vector<16x32xf32>
    %121 = vector.broadcast %100 : vector<1x32xf32> to vector<16x32xf32>
    %122 = arith.addf %120, %121 : vector<16x32xf32>
    %123 = arith.truncf %122 : vector<16x32xf32> to vector<16x32xbf16>
    %c0_35 = arith.constant 0 : index
    %c0_36 = arith.constant 0 : index
    %c0_37 = arith.constant 0 : index
    %124 = vector.load %arg10[%c0_35, %c0_36, %c0_37] : memref<1x32x128xbf16, #tpu.memory_space<vmem>>, vector<1x32x128xbf16>
    %125 = vector.shape_cast %124 : vector<1x32x128xbf16> to vector<32x128xbf16>
    %cst_38 = arith.constant dense<0.000000e+00> : vector<16x128xf32>
    %126 = tpu.matmul %123, %125, %cst_38 {dimension_numbers = #tpu.dot_dimension_numbers<[1], [0], [0], [1], [0, 0, 1, 1], [], []>} : vector<16x32xbf16>, vector<32x128xbf16>, vector<16x128xf32> -> vector<16x128xf32>
    %c0_39 = arith.constant 0 : index
    %c0_40 = arith.constant 0 : index
    %c0_41 = arith.constant 0 : index
    %127 = vector.load %arg11[%c0_39, %c0_40, %c0_41] : memref<1x1x128xf32, #tpu.memory_space<vmem>>, vector<1x1x128xf32>
    %128 = vector.shape_cast %127 : vector<1x1x128xf32> to vector<1x128xf32>
    %129 = vector.broadcast %128 : vector<1x128xf32> to vector<16x128xf32>
    %130 = arith.addf %126, %129 : vector<16x128xf32>
    %cst_42 = arith.constant 0.000000e+00 : f32
    %131 = vector.broadcast %cst_42 : f32 to vector<16x128xf32>
    %132 = arith.maximumf %130, %131 : vector<16x128xf32>
    %133 = arith.truncf %132 : vector<16x128xf32> to vector<16x128xbf16>
    %c0_43 = arith.constant 0 : index
    %c0_44 = arith.constant 0 : index
    %c0_45 = arith.constant 0 : index
    %134 = vector.load %arg12[%c0_43, %c0_44, %c0_45] : memref<1x128x32xbf16, #tpu.memory_space<vmem>>, vector<1x128x32xbf16>
    %135 = vector.shape_cast %134 : vector<1x128x32xbf16> to vector<128x32xbf16>
    %cst_46 = arith.constant dense<0.000000e+00> : vector<16x32xf32>
    %136 = tpu.matmul %133, %135, %cst_46 {dimension_numbers = #tpu.dot_dimension_numbers<[1], [0], [0], [1], [0, 0, 1, 1], [], []>} : vector<16x128xbf16>, vector<128x32xbf16>, vector<16x32xf32> -> vector<16x32xf32>
    %c0_47 = arith.constant 0 : index
    %c0_48 = arith.constant 0 : index
    %c0_49 = arith.constant 0 : index
    %137 = vector.load %arg13[%c0_47, %c0_48, %c0_49] : memref<1x1x32xf32, #tpu.memory_space<vmem>>, vector<1x1x32xf32>
    %138 = vector.shape_cast %137 : vector<1x1x32xf32> to vector<1x32xf32>
    %139 = vector.broadcast %138 : vector<1x32xf32> to vector<16x32xf32>
    %140 = arith.addf %136, %139 : vector<16x32xf32>
    %141 = arith.addf %140, %122 : vector<16x32xf32>
    %c0_50 = arith.constant 0 : index
    %c0_51 = arith.constant 0 : index
    %c0_52 = arith.constant 0 : index
    %142 = vector.load %arg14[%c0_50, %c0_51, %c0_52] : memref<1x1x32xf32, #tpu.memory_space<vmem>>, vector<1x1x32xf32>
    %143 = vector.shape_cast %142 : vector<1x1x32xf32> to vector<1x32xf32>
    %c0_53 = arith.constant 0 : index
    %c0_54 = arith.constant 0 : index
    %c0_55 = arith.constant 0 : index
    %144 = vector.load %arg15[%c0_53, %c0_54, %c0_55] : memref<1x1x32xf32, #tpu.memory_space<vmem>>, vector<1x1x32xf32>
    %145 = vector.shape_cast %144 : vector<1x1x32xf32> to vector<1x32xf32>
    %cst_56 = arith.constant dense<0.000000e+00> : vector<16xf32>
    %146 = vector.multi_reduction <add>, %141, %cst_56 [1] : vector<16x32xf32> to vector<16xf32>
    %147 = vector.shape_cast %146 : vector<16xf32> to vector<16x1xf32>
    %cst_57 = arith.constant 3.200000e+01 : f32
    %148 = vector.broadcast %cst_57 : f32 to vector<16x1xf32>
    %149 = arith.divf %147, %148 : vector<16x1xf32>
    %150 = vector.broadcast %149 : vector<16x1xf32> to vector<16x32xf32>
    %151 = arith.subf %141, %150 : vector<16x32xf32>
    %152 = arith.mulf %151, %151 : vector<16x32xf32>
    %cst_58 = arith.constant dense<0.000000e+00> : vector<16xf32>
    %153 = vector.multi_reduction <add>, %152, %cst_58 [1] : vector<16x32xf32> to vector<16xf32>
    %154 = vector.shape_cast %153 : vector<16xf32> to vector<16x1xf32>
    %cst_59 = arith.constant 3.200000e+01 : f32
    %155 = vector.broadcast %cst_59 : f32 to vector<16x1xf32>
    %156 = arith.divf %154, %155 : vector<16x1xf32>
    %157 = vector.broadcast %149 : vector<16x1xf32> to vector<16x32xf32>
    %158 = arith.subf %141, %157 : vector<16x32xf32>
    %cst_60 = arith.constant 9.99999974E-6 : f32
    %159 = vector.broadcast %cst_60 : f32 to vector<16x1xf32>
    %160 = arith.addf %156, %159 : vector<16x1xf32>
    %161 = math.rsqrt %160 : vector<16x1xf32>
    %162 = vector.broadcast %161 : vector<16x1xf32> to vector<16x32xf32>
    %163 = arith.mulf %158, %162 : vector<16x32xf32>
    %164 = vector.broadcast %143 : vector<1x32xf32> to vector<16x32xf32>
    %165 = arith.mulf %163, %164 : vector<16x32xf32>
    %166 = vector.broadcast %145 : vector<1x32xf32> to vector<16x32xf32>
    %167 = arith.addf %165, %166 : vector<16x32xf32>
    %c0_61 = arith.constant 0 : index
    %c0_62 = arith.constant 0 : index
    %168 = vector.load %arg17[%c0_61, %c0_62] : memref<16x32xf32, #tpu.memory_space<vmem>>, vector<16x32xf32>
    tpu.vector_store %arg17[%c0_61, %c0_62], %167 {strides = array<i32>} : memref<16x32xf32, #tpu.memory_space<vmem>>, vector<16x32xf32>,
    %c1_i32 = arith.constant 1 : i32
    %169 = arith.cmpi eq, %arg1, %c1_i32 : i32
    %170 = arith.extui %169 : i1 to i32
    %c0_i32_63 = arith.constant 0 : i32
    %171 = arith.cmpi ne, %170, %c0_i32_63 : i32
    scf.if %171 {
      %c0_64 = arith.constant 0 : index
      %c0_65 = arith.constant 0 : index
      %172 = vector.load %arg16[%c0_64, %c0_65] : memref<16x32xf32, #tpu.memory_space<vmem>>, vector<16x32xf32>
      tpu.vector_store %arg16[%c0_64, %c0_65], %167 {strides = array<i32>} : memref<16x32xf32, #tpu.memory_space<vmem>>, vector<16x32xf32>,
    } else {
    }
    return
  }
  func.func @transform_0(%arg0: i32, %arg1: i32) -> (i32, i32) {
    %c0_i32 = arith.constant 0 : i32
    %c0_i32_0 = arith.constant 0 : i32
    return %arg0, %c0_i32 : i32, i32
  }
  func.func @transform_1(%arg0: i32, %arg1: i32) -> (i32, i32, i32) {
    %c0_i32 = arith.constant 0 : i32
    %c0_i32_0 = arith.constant 0 : i32
    %c0_i32_1 = arith.constant 0 : i32
    return %arg0, %c0_i32, %c0_i32_0 : i32, i32, i32
  }
  func.func @transform_2(%arg0: i32, %arg1: i32) -> (i32, i32, i32) {
    %c0_i32 = arith.constant 0 : i32
    %c0_i32_0 = arith.constant 0 : i32
    %c0_i32_1 = arith.constant 0 : i32
    return %arg1, %c0_i32, %c0_i32_0 : i32, i32, i32
  }
  func.func @transform_3(%arg0: i32, %arg1: i32) -> (i32, i32, i32) {
    %c0_i32 = arith.constant 0 : i32
    %c0_i32_0 = arith.constant 0 : i32
    %c0_i32_1 = arith.constant 0 : i32
    return %arg1, %c0_i32, %c0_i32_0 : i32, i32, i32
  }
  func.func @transform_4(%arg0: i32, %arg1: i32) -> (i32, i32, i32) {
    %c0_i32 = arith.constant 0 : i32
    %c0_i32_0 = arith.constant 0 : i32
    %c0_i32_1 = arith.constant 0 : i32
    return %arg1, %c0_i32, %c0_i32_0 : i32, i32, i32
  }
  func.func @transform_5(%arg0: i32, %arg1: i32) -> (i32, i32, i32) {
    %c0_i32 = arith.constant 0 : i32
    %c0_i32_0 = arith.constant 0 : i32
    %c0_i32_1 = arith.constant 0 : i32
    return %arg1, %c0_i32, %c0_i32_0 : i32, i32, i32
  }
  func.func @transform_6(%arg0: i32, %arg1: i32) -> (i32, i32, i32) {
    %c0_i32 = arith.constant 0 : i32
    %c0_i32_0 = arith.constant 0 : i32
    %c0_i32_1 = arith.constant 0 : i32
    return %arg1, %c0_i32, %c0_i32_0 : i32, i32, i32
  }
  func.func @transform_7(%arg0: i32, %arg1: i32) -> (i32, i32, i32) {
    %c0_i32 = arith.constant 0 : i32
    %c0_i32_0 = arith.constant 0 : i32
    %c0_i32_1 = arith.constant 0 : i32
    return %arg1, %c0_i32, %c0_i32_0 : i32, i32, i32
  }
  func.func @transform_8(%arg0: i32, %arg1: i32) -> (i32, i32, i32) {
    %c0_i32 = arith.constant 0 : i32
    %c0_i32_0 = arith.constant 0 : i32
    %c0_i32_1 = arith.constant 0 : i32
    return %arg1, %c0_i32, %c0_i32_0 : i32, i32, i32
  }
  func.func @transform_9(%arg0: i32, %arg1: i32) -> (i32, i32, i32) {
    %c0_i32 = arith.constant 0 : i32
    %c0_i32_0 = arith.constant 0 : i32
    %c0_i32_1 = arith.constant 0 : i32
    return %arg1, %c0_i32, %c0_i32_0 : i32, i32, i32
  }
  func.func @transform_10(%arg0: i32, %arg1: i32) -> (i32, i32, i32) {
    %c0_i32 = arith.constant 0 : i32
    %c0_i32_0 = arith.constant 0 : i32
    %c0_i32_1 = arith.constant 0 : i32
    return %arg1, %c0_i32, %c0_i32_0 : i32, i32, i32
  }
  func.func @transform_11(%arg0: i32, %arg1: i32) -> (i32, i32, i32) {
    %c0_i32 = arith.constant 0 : i32
    %c0_i32_0 = arith.constant 0 : i32
    %c0_i32_1 = arith.constant 0 : i32
    return %arg1, %c0_i32, %c0_i32_0 : i32, i32, i32
  }
  func.func @transform_12(%arg0: i32, %arg1: i32) -> (i32, i32, i32) {
    %c0_i32 = arith.constant 0 : i32
    %c0_i32_0 = arith.constant 0 : i32
    %c0_i32_1 = arith.constant 0 : i32
    return %arg1, %c0_i32, %c0_i32_0 : i32, i32, i32
  }
  func.func @transform_13(%arg0: i32, %arg1: i32) -> (i32, i32, i32) {
    %c0_i32 = arith.constant 0 : i32
    %c0_i32_0 = arith.constant 0 : i32
    %c0_i32_1 = arith.constant 0 : i32
    return %arg1, %c0_i32, %c0_i32_0 : i32, i32, i32
  }
  func.func @transform_14(%arg0: i32, %arg1: i32) -> (i32, i32) {
    %c0_i32 = arith.constant 0 : i32
    %c0_i32_0 = arith.constant 0 : i32
    return %arg0, %c0_i32 : i32, i32
  }
}

</mosaic_0001>

<llo_original>
// kernel: tpu_custom_call.1
$region0: #{tpu_custom_call.1}
  #allocation0 [shape = 'u32[]', space=smem, size = 0x4, offset = 0x4, fixed_abs, tag = 'smem constant byte address 0x4 - core index']
  #allocation1 [shape = 'u32[144,128]{1,0:T(1,128)}', space=vmem, size = 0x12000, scoped, tag = 'internal scratch']
  #allocation2 [shape = 'f32[16,32]{1,0:T(8,128)}', space=vmem, size = 0x2000, scoped, tag = 'scratch operand']
  %s0 = inlined_call_operand.vmem [shape: f32[16,32], index: 0, kind: input, shape index: {}]
  %s1 = inlined_call_operand.vmem [shape: f32[2,1,8], index: 1, kind: input, shape index: {}]
  %s2 = inlined_call_operand.vmem [shape: bf16[2,32,32], index: 2, kind: input, shape index: {}]
  %s3 = inlined_call_operand.vmem [shape: bf16[2,32,32], index: 3, kind: input, shape index: {}]
  %s4 = inlined_call_operand.vmem [shape: bf16[2,32,32], index: 4, kind: input, shape index: {}]
  %s5 = inlined_call_operand.vmem [shape: f32[2,1,32], index: 5, kind: input, shape index: {}]
  %s6 = inlined_call_operand.vmem [shape: f32[2,1,32], index: 6, kind: input, shape index: {}]
  %s7 = inlined_call_operand.vmem [shape: f32[2,1,32], index: 7, kind: input, shape index: {}]
  %s8 = inlined_call_operand.vmem [shape: bf16[2,32,128], index: 8, kind: input, shape index: {}]
  %s9 = inlined_call_operand.vmem [shape: f32[2,1,128], index: 9, kind: input, shape index: {}]
  %s10 = inlined_call_operand.vmem [shape: bf16[2,128,32], index: 10, kind: input, shape index: {}]
  %s11 = inlined_call_operand.vmem [shape: f32[2,1,32], index: 11, kind: input, shape index: {}]
  %s12 = inlined_call_operand.vmem [shape: f32[2,1,32], index: 12, kind: input, shape index: {}]
  %s13 = inlined_call_operand.vmem [shape: f32[2,1,32], index: 13, kind: input, shape index: {}]
  %s14 = inlined_call_operand.hbm [shape: f32[16,32], index: 14, kind: output, shape index: {}]
  %s15 = sld [smem:[#allocation0]]
  $region97: #{tpu_custom_call.1} parent=0
    _
  %s17 = ssub.s32 1, %s15
  %s18 = scalar_select 0, %s17, %s15
  $region1: #{tpu_custom_call.1} parent=0
    #allocation3 [shape = 'u8[8192]{0}', space=vmem, size = 0x2000, scoped, tag = 'output window, operand 0, single buffered']
    #allocation4 [shape = 's32[2]{0}', space=sflag, size = 0x8, scoped, tag = 'scoped memory for tpu_custom_call.1']
    %19 = vsyncpa [#allocation4], 0
    loop: start=0, step=1, limit=4
    $region2: #{tpu_custom_call.1} parent=1 // loop_pre_header
      _
    $region3: #{tpu_custom_call.1} parent=1 // loop_header
      %s21 = sphi 0, %s25
      %p22 = scmp.ge.s32.totalorder %s21, 4
      %s28 = sphi 0, %s40
      %s29 = sphi 0, %s36
      %s30 = sphi 0, %s28
      %s31 = sphi 0, %s29
      %s32 = sphi 0, %s30
      %s33 = sphi 0, %s31
      %s43 = sphi 0, %s45
      %s46 = sphi 0, %s43
      %s47 = sphi 0, %s46
      %s63 = sphi 0, %s47
      %s69 = sphi 0, %s71
      %s72 = sphi 0, %s69
      %s73 = sphi 0, %s72
      %s89 = sphi 0, %s73
      %s95 = sphi 0, %s97
      %s98 = sphi 0, %s95
      %s99 = sphi 0, %s98
      %s115 = sphi 0, %s99
      %s121 = sphi 0, %s123
      %s124 = sphi 0, %s121
      %s125 = sphi 0, %s124
      %s141 = sphi 0, %s125
      %s147 = sphi 0, %s149
      %s150 = sphi 0, %s147
      %s151 = sphi 0, %s150
      %s167 = sphi 0, %s151
      %s173 = sphi 0, %s175
      %s176 = sphi 0, %s173
      %s177 = sphi 0, %s176
      %s193 = sphi 0, %s177
      %s199 = sphi 0, %s201
      %s202 = sphi 0, %s199
      %s203 = sphi 0, %s202
      %s219 = sphi 0, %s203
      %s225 = sphi 0, %s227
      %s228 = sphi 0, %s225
      %s229 = sphi 0, %s228
      %s245 = sphi 0, %s229
      %s251 = sphi 0, %s253
      %s254 = sphi 0, %s251
      %s255 = sphi 0, %s254
      %s271 = sphi 0, %s255
      %s277 = sphi 0, %s279
      %s280 = sphi 0, %s277
      %s281 = sphi 0, %s280
      %s297 = sphi 0, %s281
      %s303 = sphi 0, %s305
      %s306 = sphi 0, %s303
      %s307 = sphi 0, %s306
      %s323 = sphi 0, %s307
      %s329 = sphi 0, %s331
      %s332 = sphi 0, %s329
      %s333 = sphi 0, %s332
      %s349 = sphi 0, %s333
      %s355 = sphi 0, %s357
      %s358 = sphi 0, %s355
      %s359 = sphi 0, %s358
      %s375 = sphi 0, %s359
      %s381 = sphi 0, %s383
      %s384 = sphi 0, %s381
      %s385 = sphi 0, %s384
      %s401 = sphi 0, %s385
      %s407 = sphi 0, %s409
      %s410 = sphi 0, %s407
      %s411 = sphi 0, %s410
      %s427 = sphi 0, %s411
    $region4: #{tpu_custom_call.1} parent=1 // loop_header_branch
      %24 = sbr.rel (%p22) target = $region8
    $region5: #{tpu_custom_call.1} parent=1 // loop_body
      %s26 = ssub.s32 %s21, 1
      %s27 = ssub.s32 %s21, 2
      %s34 = sadd.s32 1, %s29
      %p35 = scmp.ge.s32.totalorder %s34, 2
      %s36 = scalar_select %p35, 0, %s34
      %s37 = sadd.s32 1, %s28
      %s38 = scalar_select %p35, %s37, %s28
      %p39 = scmp.ge.s32.totalorder %s38, 1
      %s40 = scalar_select %p39, 0, %s38
      %s41 = ssub.s32 %s28, %s40
      %p42 = scmp.eq.s32.totalorder %s41, 0
      %s44 = sadd.s32 %s43, 1
      %s45 = scalar_select %p42, %s43, %s44
      %p48 = pneg %p42
      %p49 = scmp.eq.s32.totalorder %s21, 1
      %p50 = por %p48, %p49
      %p51 = scmp.ne.s32.totalorder %s43, %s46
      %p52 = scmp.eq.s32.totalorder %s21, 0
      %p53 = por %p51, %p52
      %p54 = scmp.ne.s32.totalorder %s43, %s46
      %p55 = scmp.eq.s32.totalorder %s26, 1
      %p56 = por %p54, %p55
      %p57 = scmp.ne.s32.totalorder %s46, %s47
      %p58 = scmp.eq.s32.totalorder %s26, 0
      %p59 = por %p57, %p58
      %p60 = scmp.ne.s32.totalorder %s46, %s47
      %p61 = scmp.eq.s32.totalorder %s27, 1
      %p62 = por %p60, %p61
      %p64 = scmp.ne.s32.totalorder %s47, %s63
      %p65 = scmp.eq.s32.totalorder %s27, 0
      %p66 = por %p64, %p65
      %s67 = ssub.s32 %s28, %s40
      %p68 = scmp.eq.s32.totalorder %s67, 0
      %s70 = sadd.s32 %s69, 1
      %s71 = scalar_select %p68, %s69, %s70
      %p74 = pneg %p68
      %p75 = scmp.eq.s32.totalorder %s21, 1
      %p76 = por %p74, %p75
      %p77 = scmp.ne.s32.totalorder %s69, %s72
      %p78 = scmp.eq.s32.totalorder %s21, 0
      %p79 = por %p77, %p78
      %p80 = scmp.ne.s32.totalorder %s69, %s72
      %p81 = scmp.eq.s32.totalorder %s26, 1
      %p82 = por %p80, %p81
      %p83 = scmp.ne.s32.totalorder %s72, %s73
      %p84 = scmp.eq.s32.totalorder %s26, 0
      %p85 = por %p83, %p84
      %p86 = scmp.ne.s32.totalorder %s72, %s73
      %p87 = scmp.eq.s32.totalorder %s27, 1
      %p88 = por %p86, %p87
      %p90 = scmp.ne.s32.totalorder %s73, %s89
      %p91 = scmp.eq.s32.totalorder %s27, 0
      %p92 = por %p90, %p91
      %s93 = ssub.s32 %s29, %s36
      %p94 = scmp.eq.s32.totalorder %s93, 0
      %s96 = sadd.s32 %s95, 1
      %s97 = scalar_select %p94, %s95, %s96
      %p100 = pneg %p94
      %p101 = scmp.eq.s32.totalorder %s21, 1
      %p102 = por %p100, %p101
      %p103 = scmp.ne.s32.totalorder %s95, %s98
      %p104 = scmp.eq.s32.totalorder %s21, 0
      %p105 = por %p103, %p104
      %p106 = scmp.ne.s32.totalorder %s95, %s98
      %p107 = scmp.eq.s32.totalorder %s26, 1
      %p108 = por %p106, %p107
      %p109 = scmp.ne.s32.totalorder %s98, %s99
      %p110 = scmp.eq.s32.totalorder %s26, 0
      %p111 = por %p109, %p110
      %p112 = scmp.ne.s32.totalorder %s98, %s99
      %p113 = scmp.eq.s32.totalorder %s27, 1
      %p114 = por %p112, %p113
      %p116 = scmp.ne.s32.totalorder %s99, %s115
      %p117 = scmp.eq.s32.totalorder %s27, 0
      %p118 = por %p116, %p117
      %s119 = ssub.s32 %s29, %s36
      %p120 = scmp.eq.s32.totalorder %s119, 0
      %s122 = sadd.s32 %s121, 1
      %s123 = scalar_select %p120, %s121, %s122
      %p126 = pneg %p120
      %p127 = scmp.eq.s32.totalorder %s21, 1
      %p128 = por %p126, %p127
      %p129 = scmp.ne.s32.totalorder %s121, %s124
      %p130 = scmp.eq.s32.totalorder %s21, 0
      %p131 = por %p129, %p130
      %p132 = scmp.ne.s32.totalorder %s121, %s124
      %p133 = scmp.eq.s32.totalorder %s26, 1
      %p134 = por %p132, %p133
      %p135 = scmp.ne.s32.totalorder %s124, %s125
      %p136 = scmp.eq.s32.totalorder %s26, 0
      %p137 = por %p135, %p136
      %p138 = scmp.ne.s32.totalorder %s124, %s125
      %p139 = scmp.eq.s32.totalorder %s27, 1
      %p140 = por %p138, %p139
      %p142 = scmp.ne.s32.totalorder %s125, %s141
      %p143 = scmp.eq.s32.totalorder %s27, 0
      %p144 = por %p142, %p143
      %s145 = ssub.s32 %s29, %s36
      %p146 = scmp.eq.s32.totalorder %s145, 0
      %s148 = sadd.s32 %s147, 1
      %s149 = scalar_select %p146, %s147, %s148
      %p152 = pneg %p146
      %p153 = scmp.eq.s32.totalorder %s21, 1
      %p154 = por %p152, %p153
      %p155 = scmp.ne.s32.totalorder %s147, %s150
      %p156 = scmp.eq.s32.totalorder %s21, 0
      %p157 = por %p155, %p156
      %p158 = scmp.ne.s32.totalorder %s147, %s150
      %p159 = scmp.eq.s32.totalorder %s26, 1
      %p160 = por %p158, %p159
      %p161 = scmp.ne.s32.totalorder %s150, %s151
      %p162 = scmp.eq.s32.totalorder %s26, 0
      %p163 = por %p161, %p162
      %p164 = scmp.ne.s32.totalorder %s150, %s151
      %p165 = scmp.eq.s32.totalorder %s27, 1
      %p166 = por %p164, %p165
      %p168 = scmp.ne.s32.totalorder %s151, %s167
      %p169 = scmp.eq.s32.totalorder %s27, 0
      %p170 = por %p168, %p169
      %s171 = ssub.s32 %s29, %s36
      %p172 = scmp.eq.s32.totalorder %s171, 0
      %s174 = sadd.s32 %s173, 1
      %s175 = scalar_select %p172, %s173, %s174
      %p178 = pneg %p172
      %p179 = scmp.eq.s32.totalorder %s21, 1
      %p180 = por %p178, %p179
      %p181 = scmp.ne.s32.totalorder %s173, %s176
      %p182 = scmp.eq.s32.totalorder %s21, 0
      %p183 = por %p181, %p182
      %p184 = scmp.ne.s32.totalorder %s173, %s176
      %p185 = scmp.eq.s32.totalorder %s26, 1
      %p186 = por %p184, %p185
      %p187 = scmp.ne.s32.totalorder %s176, %s177
      %p188 = scmp.eq.s32.totalorder %s26, 0
      %p189 = por %p187, %p188
      %p190 = scmp.ne.s32.totalorder %s176, %s177
      %p191 = scmp.eq.s32.totalorder %s27, 1
      %p192 = por %p190, %p191
      %p194 = scmp.ne.s32.totalorder %s177, %s193
      %p195 = scmp.eq.s32.totalorder %s27, 0
      %p196 = por %p194, %p195
      %s197 = ssub.s32 %s29, %s36
      %p198 = scmp.eq.s32.totalorder %s197, 0
      %s200 = sadd.s32 %s199, 1
      %s201 = scalar_select %p198, %s199, %s200
      %p204 = pneg %p198
      %p205 = scmp.eq.s32.totalorder %s21, 1
      %p206 = por %p204, %p205
      %p207 = scmp.ne.s32.totalorder %s199, %s202
      %p208 = scmp.eq.s32.totalorder %s21, 0
      %p209 = por %p207, %p208
      %p210 = scmp.ne.s32.totalorder %s199, %s202
      %p211 = scmp.eq.s32.totalorder %s26, 1
      %p212 = por %p210, %p211
      %p213 = scmp.ne.s32.totalorder %s202, %s203
      %p214 = scmp.eq.s32.totalorder %s26, 0
      %p215 = por %p213, %p214
      %p216 = scmp.ne.s32.totalorder %s202, %s203
      %p217 = scmp.eq.s32.totalorder %s27, 1
      %p218 = por %p216, %p217
      %p220 = scmp.ne.s32.totalorder %s203, %s219
      %p221 = scmp.eq.s32.totalorder %s27, 0
      %p222 = por %p220, %p221
      %s223 = ssub.s32 %s29, %s36
      %p224 = scmp.eq.s32.totalorder %s223, 0
      %s226 = sadd.s32 %s225, 1
      %s227 = scalar_select %p224, %s225, %s226
      %p230 = pneg %p224
      %p231 = scmp.eq.s32.totalorder %s21, 1
      %p232 = por %p230, %p231
      %p233 = scmp.ne.s32.totalorder %s225, %s228
      %p234 = scmp.eq.s32.totalorder %s21, 0
      %p235 = por %p233, %p234
      %p236 = scmp.ne.s32.totalorder %s225, %s228
      %p237 = scmp.eq.s32.totalorder %s26, 1
      %p238 = por %p236, %p237
      %p239 = scmp.ne.s32.totalorder %s228, %s229
      %p240 = scmp.eq.s32.totalorder %s26, 0
      %p241 = por %p239, %p240
      %p242 = scmp.ne.s32.totalorder %s228, %s229
      %p243 = scmp.eq.s32.totalorder %s27, 1
      %p244 = por %p242, %p243
      %p246 = scmp.ne.s32.totalorder %s229, %s245
      %p247 = scmp.eq.s32.totalorder %s27, 0
      %p248 = por %p246, %p247
      %s249 = ssub.s32 %s29, %s36
      %p250 = scmp.eq.s32.totalorder %s249, 0
      %s252 = sadd.s32 %s251, 1
      %s253 = scalar_select %p250, %s251, %s252
      %p256 = pneg %p250
      %p257 = scmp.eq.s32.totalorder %s21, 1
      %p258 = por %p256, %p257
      %p259 = scmp.ne.s32.totalorder %s251, %s254
      %p260 = scmp.eq.s32.totalorder %s21, 0
      %p261 = por %p259, %p260
      %p262 = scmp.ne.s32.totalorder %s251, %s254
      %p263 = scmp.eq.s32.totalorder %s26, 1
      %p264 = por %p262, %p263
      %p265 = scmp.ne.s32.totalorder %s254, %s255
      %p266 = scmp.eq.s32.totalorder %s26, 0
      %p267 = por %p265, %p266
      %p268 = scmp.ne.s32.totalorder %s254, %s255
      %p269 = scmp.eq.s32.totalorder %s27, 1
      %p270 = por %p268, %p269
      %p272 = scmp.ne.s32.totalorder %s255, %s271
      %p273 = scmp.eq.s32.totalorder %s27, 0
      %p274 = por %p272, %p273
      %s275 = ssub.s32 %s29, %s36
      %p276 = scmp.eq.s32.totalorder %s275, 0
      %s278 = sadd.s32 %s277, 1
      %s279 = scalar_select %p276, %s277, %s278
      %p282 = pneg %p276
      %p283 = scmp.eq.s32.totalorder %s21, 1
      %p284 = por %p282, %p283
      %p285 = scmp.ne.s32.totalorder %s277, %s280
      %p286 = scmp.eq.s32.totalorder %s21, 0
      %p287 = por %p285, %p286
      %p288 = scmp.ne.s32.totalorder %s277, %s280
      %p289 = scmp.eq.s32.totalorder %s26, 1
      %p290 = por %p288, %p289
      %p291 = scmp.ne.s32.totalorder %s280, %s281
      %p292 = scmp.eq.s32.totalorder %s26, 0
      %p293 = por %p291, %p292
      %p294 = scmp.ne.s32.totalorder %s280, %s281
      %p295 = scmp.eq.s32.totalorder %s27, 1
      %p296 = por %p294, %p295
      %p298 = scmp.ne.s32.totalorder %s281, %s297
      %p299 = scmp.eq.s32.totalorder %s27, 0
      %p300 = por %p298, %p299
      %s301 = ssub.s32 %s29, %s36
      %p302 = scmp.eq.s32.totalorder %s301, 0
      %s304 = sadd.s32 %s303, 1
      %s305 = scalar_select %p302, %s303, %s304
      %p308 = pneg %p302
      %p309 = scmp.eq.s32.totalorder %s21, 1
      %p310 = por %p308, %p309
      %p311 = scmp.ne.s32.totalorder %s303, %s306
      %p312 = scmp.eq.s32.totalorder %s21, 0
      %p313 = por %p311, %p312
      %p314 = scmp.ne.s32.totalorder %s303, %s306
      %p315 = scmp.eq.s32.totalorder %s26, 1
      %p316 = por %p314, %p315
      %p317 = scmp.ne.s32.totalorder %s306, %s307
      %p318 = scmp.eq.s32.totalorder %s26, 0
      %p319 = por %p317, %p318
      %p320 = scmp.ne.s32.totalorder %s306, %s307
      %p321 = scmp.eq.s32.totalorder %s27, 1
      %p322 = por %p320, %p321
      %p324 = scmp.ne.s32.totalorder %s307, %s323
      %p325 = scmp.eq.s32.totalorder %s27, 0
      %p326 = por %p324, %p325
      %s327 = ssub.s32 %s29, %s36
      %p328 = scmp.eq.s32.totalorder %s327, 0
      %s330 = sadd.s32 %s329, 1
      %s331 = scalar_select %p328, %s329, %s330
      %p334 = pneg %p328
      %p335 = scmp.eq.s32.totalorder %s21, 1
      %p336 = por %p334, %p335
      %p337 = scmp.ne.s32.totalorder %s329, %s332
      %p338 = scmp.eq.s32.totalorder %s21, 0
      %p339 = por %p337, %p338
      %p340 = scmp.ne.s32.totalorder %s329, %s332
      %p341 = scmp.eq.s32.totalorder %s26, 1
      %p342 = por %p340, %p341
      %p343 = scmp.ne.s32.totalorder %s332, %s333
      %p344 = scmp.eq.s32.totalorder %s26, 0
      %p345 = por %p343, %p344
      %p346 = scmp.ne.s32.totalorder %s332, %s333
      %p347 = scmp.eq.s32.totalorder %s27, 1
      %p348 = por %p346, %p347
      %p350 = scmp.ne.s32.totalorder %s333, %s349
      %p351 = scmp.eq.s32.totalorder %s27, 0
      %p352 = por %p350, %p351
      %s353 = ssub.s32 %s29, %s36
      %p354 = scmp.eq.s32.totalorder %s353, 0
      %s356 = sadd.s32 %s355, 1
      %s357 = scalar_select %p354, %s355, %s356
      %p360 = pneg %p354
      %p361 = scmp.eq.s32.totalorder %s21, 1
      %p362 = por %p360, %p361
      %p363 = scmp.ne.s32.totalorder %s355, %s358
      %p364 = scmp.eq.s32.totalorder %s21, 0
      %p365 = por %p363, %p364
      %p366 = scmp.ne.s32.totalorder %s355, %s358
      %p367 = scmp.eq.s32.totalorder %s26, 1
      %p368 = por %p366, %p367
      %p369 = scmp.ne.s32.totalorder %s358, %s359
      %p370 = scmp.eq.s32.totalorder %s26, 0
      %p371 = por %p369, %p370
      %p372 = scmp.ne.s32.totalorder %s358, %s359
      %p373 = scmp.eq.s32.totalorder %s27, 1
      %p374 = por %p372, %p373
      %p376 = scmp.ne.s32.totalorder %s359, %s375
      %p377 = scmp.eq.s32.totalorder %s27, 0
      %p378 = por %p376, %p377
      %s379 = ssub.s32 %s29, %s36
      %p380 = scmp.eq.s32.totalorder %s379, 0
      %s382 = sadd.s32 %s381, 1
      %s383 = scalar_select %p380, %s381, %s382
      %p386 = pneg %p380
      %p387 = scmp.eq.s32.totalorder %s21, 1
      %p388 = por %p386, %p387
      %p389 = scmp.ne.s32.totalorder %s381, %s384
      %p390 = scmp.eq.s32.totalorder %s21, 0
      %p391 = por %p389, %p390
      %p392 = scmp.ne.s32.totalorder %s381, %s384
      %p393 = scmp.eq.s32.totalorder %s26, 1
      %p394 = por %p392, %p393
      %p395 = scmp.ne.s32.totalorder %s384, %s385
      %p396 = scmp.eq.s32.totalorder %s26, 0
      %p397 = por %p395, %p396
      %p398 = scmp.ne.s32.totalorder %s384, %s385
      %p399 = scmp.eq.s32.totalorder %s27, 1
      %p400 = por %p398, %p399
      %p402 = scmp.ne.s32.totalorder %s385, %s401
      %p403 = scmp.eq.s32.totalorder %s27, 0
      %p404 = por %p402, %p403
      %s405 = ssub.s32 %s28, %s40
      %p406 = scmp.eq.s32.totalorder %s405, 0
      %s408 = sadd.s32 %s407, 1
      %s409 = scalar_select %p406, %s407, %s408
      %p412 = pneg %p406
      %p413 = scmp.eq.s32.totalorder %s21, 1
      %p414 = por %p412, %p413
      %p415 = scmp.ne.s32.totalorder %s407, %s410
      %p416 = scmp.eq.s32.totalorder %s21, 0
      %p417 = por %p415, %p416
      %p418 = scmp.ne.s32.totalorder %s407, %s410
      %p419 = scmp.eq.s32.totalorder %s26, 1
      %p420 = por %p418, %p419
      %p421 = scmp.ne.s32.totalorder %s410, %s411
      %p422 = scmp.eq.s32.totalorder %s26, 0
      %p423 = por %p421, %p422
      %p424 = scmp.ne.s32.totalorder %s410, %s411
      %p425 = scmp.eq.s32.totalorder %s27, 1
      %p426 = por %p424, %p425
      %p428 = scmp.ne.s32.totalorder %s411, %s427
      %p429 = scmp.eq.s32.totalorder %s27, 0
      %p430 = por %p428, %p429
      %p431 = scmp.le.s32.totalorder 1, %s21
      %p432 = scmp.lt.s32.totalorder %s21, 3
      %p433 = pnand %p431, %p432
      %p434 = pneg %p433
      // Predicated region
      $region9: #{tpu_custom_call.1} parent=5 // pred_check
        _
      $region10: #{tpu_custom_call.1} parent=5 // pred_check_branch
        %436 = sbr.rel (%p433) target = $region12
      $region11: #{tpu_custom_call.1} parent=5 // pred_region
        %s437 = ssub.s32 %s21, 1
        // Predicated region
        $region13: #{tpu_custom_call.1} parent=11 // pred_check
          %p438 = pneg %p59
        $region14: #{tpu_custom_call.1} parent=11 // pred_check_branch
          %440 = sbr.rel (%p438) target = $region16
        $region15: #{tpu_custom_call.1} parent=11 // pred_region
          %s441 = smul.u32 2, %s30
          %p442 = scmp.lt.s32.totalorder %s441, 1
          %s443 = scalar_select %p442, %s441, 1
          %s444 = smul.addr %s443, 8
          %s445 = scalar_lea.vmem %s0, %s444
          %s446 = smul.u32 2, %s30
        $region16: #{tpu_custom_call.1} parent=11 // pred_fallthru
          _
        // Predicated region
        $region17: #{tpu_custom_call.1} parent=11 // pred_check
          %p447 = pneg %p85
        $region18: #{tpu_custom_call.1} parent=11 // pred_check_branch
          %449 = sbr.rel (%p447) target = $region20
        $region19: #{tpu_custom_call.1} parent=11 // pred_region
          %s450 = smul.u32 2, %s30
          %p451 = scmp.lt.s32.totalorder %s450, 1
          %s452 = scalar_select %p451, %s450, 1
          %s453 = scalar_lea.vmem %s1, %s452
          %s454 = smul.u32 2, %s30
        $region20: #{tpu_custom_call.1} parent=11 // pred_fallthru
          _
      $region12: #{tpu_custom_call.1} parent=5 // pred_fallthru
        _
      %p455 = scmp.lt.s32.totalorder %s21, 2
      // Predicated region
      $region21: #{tpu_custom_call.1} parent=5 // pred_check
        %p456 = pneg %p455
      $region22: #{tpu_custom_call.1} parent=5 // pred_check_branch
        %458 = sbr.rel (%p456) target = $region24
      $region23: #{tpu_custom_call.1} parent=5 // pred_region
        // Predicated region
        $region25: #{tpu_custom_call.1} parent=23 // pred_check
          %p459 = pneg %p105
        $region26: #{tpu_custom_call.1} parent=23 // pred_check_branch
          %461 = sbr.rel (%p459) target = $region28
        $region27: #{tpu_custom_call.1} parent=23 // pred_region
          %p462 = scmp.lt.s32.totalorder %s29, 1
          %s463 = scalar_select %p462, %s29, 1
          %s464 = smul.addr %s463, 4
          %s465 = smul.addr %s464, 4
          %s466 = scalar_lea.vmem %s2, %s465
        $region28: #{tpu_custom_call.1} parent=23 // pred_fallthru
          _
        // Predicated region
        $region29: #{tpu_custom_call.1} parent=23 // pred_check
          %p467 = pneg %p131
        $region30: #{tpu_custom_call.1} parent=23 // pred_check_branch
          %469 = sbr.rel (%p467) target = $region32
        $region31: #{tpu_custom_call.1} parent=23 // pred_region
          %p470 = scmp.lt.s32.totalorder %s29, 1
          %s471 = scalar_select %p470, %s29, 1
          %s472 = smul.addr %s471, 4
          %s473 = smul.addr %s472, 4
          %s474 = scalar_lea.vmem %s3, %s473
        $region32: #{tpu_custom_call.1} parent=23 // pred_fallthru
          _
        // Predicated region
        $region33: #{tpu_custom_call.1} parent=23 // pred_check
          %p475 = pneg %p157
        $region34: #{tpu_custom_call.1} parent=23 // pred_check_branch
          %477 = sbr.rel (%p475) target = $region36
        $region35: #{tpu_custom_call.1} parent=23 // pred_region
          %p478 = scmp.lt.s32.totalorder %s29, 1
          %s479 = scalar_select %p478, %s29, 1
          %s480 = smul.addr %s479, 4
          %s481 = smul.addr %s480, 4
          %s482 = scalar_lea.vmem %s4, %s481
        $region36: #{tpu_custom_call.1} parent=23 // pred_fallthru
          _
        // Predicated region
        $region37: #{tpu_custom_call.1} parent=23 // pred_check
          %p483 = pneg %p183
        $region38: #{tpu_custom_call.1} parent=23 // pred_check_branch
          %485 = sbr.rel (%p483) target = $region40
        $region39: #{tpu_custom_call.1} parent=23 // pred_region
          %p486 = scmp.lt.s32.totalorder %s29, 1
          %s487 = scalar_select %p486, %s29, 1
          %s488 = scalar_lea.vmem %s5, %s487
        $region40: #{tpu_custom_call.1} parent=23 // pred_fallthru
          _
        // Predicated region
        $region41: #{tpu_custom_call.1} parent=23 // pred_check
          %p489 = pneg %p209
        $region42: #{tpu_custom_call.1} parent=23 // pred_check_branch
          %491 = sbr.rel (%p489) target = $region44
        $region43: #{tpu_custom_call.1} parent=23 // pred_region
          %p492 = scmp.lt.s32.totalorder %s29, 1
          %s493 = scalar_select %p492, %s29, 1
          %s494 = scalar_lea.vmem %s6, %s493
        $region44: #{tpu_custom_call.1} parent=23 // pred_fallthru
          _
        // Predicated region
        $region45: #{tpu_custom_call.1} parent=23 // pred_check
          %p495 = pneg %p235
        $region46: #{tpu_custom_call.1} parent=23 // pred_check_branch
          %497 = sbr.rel (%p495) target = $region48
        $region47: #{tpu_custom_call.1} parent=23 // pred_region
          %p498 = scmp.lt.s32.totalorder %s29, 1
          %s499 = scalar_select %p498, %s29, 1
          %s500 = scalar_lea.vmem %s7, %s499
        $region48: #{tpu_custom_call.1} parent=23 // pred_fallthru
          _
        // Predicated region
        $region49: #{tpu_custom_call.1} parent=23 // pred_check
          %p501 = pneg %p261
        $region50: #{tpu_custom_call.1} parent=23 // pred_check_branch
          %503 = sbr.rel (%p501) target = $region52
        $region51: #{tpu_custom_call.1} parent=23 // pred_region
          %p504 = scmp.lt.s32.totalorder %s29, 1
          %s505 = scalar_select %p504, %s29, 1
          %s506 = smul.addr %s505, 4
          %s507 = smul.addr %s506, 4
          %s508 = scalar_lea.vmem %s8, %s507
        $region52: #{tpu_custom_call.1} parent=23 // pred_fallthru
          _
        // Predicated region
        $region53: #{tpu_custom_call.1} parent=23 // pred_check
          %p509 = pneg %p287
        $region54: #{tpu_custom_call.1} parent=23 // pred_check_branch
          %511 = sbr.rel (%p509) target = $region56
        $region55: #{tpu_custom_call.1} parent=23 // pred_region
          %p512 = scmp.lt.s32.totalorder %s29, 1
          %s513 = scalar_select %p512, %s29, 1
          %s514 = scalar_lea.vmem %s9, %s513
        $region56: #{tpu_custom_call.1} parent=23 // pred_fallthru
          _
        // Predicated region
        $region57: #{tpu_custom_call.1} parent=23 // pred_check
          %p515 = pneg %p313
        $region58: #{tpu_custom_call.1} parent=23 // pred_check_branch
          %517 = sbr.rel (%p515) target = $region60
        $region59: #{tpu_custom_call.1} parent=23 // pred_region
          %p518 = scmp.lt.s32.totalorder %s29, 1
          %s519 = scalar_select %p518, %s29, 1
          %s520 = smul.addr %s519, 16
          %s521 = smul.addr %s520, 4
          %s522 = scalar_lea.vmem %s10, %s521
        $region60: #{tpu_custom_call.1} parent=23 // pred_fallthru
          _
        // Predicated region
        $region61: #{tpu_custom_call.1} parent=23 // pred_check
          %p523 = pneg %p339
        $region62: #{tpu_custom_call.1} parent=23 // pred_check_branch
          %525 = sbr.rel (%p523) target = $region64
        $region63: #{tpu_custom_call.1} parent=23 // pred_region
          %p526 = scmp.lt.s32.totalorder %s29, 1
          %s527 = scalar_select %p526, %s29, 1
          %s528 = scalar_lea.vmem %s11, %s527
        $region64: #{tpu_custom_call.1} parent=23 // pred_fallthru
          _
        // Predicated region
        $region65: #{tpu_custom_call.1} parent=23 // pred_check
          %p529 = pneg %p365
        $region66: #{tpu_custom_call.1} parent=23 // pred_check_branch
          %531 = sbr.rel (%p529) target = $region68
        $region67: #{tpu_custom_call.1} parent=23 // pred_region
          %p532 = scmp.lt.s32.totalorder %s29, 1
          %s533 = scalar_select %p532, %s29, 1
          %s534 = scalar_lea.vmem %s12, %s533
        $region68: #{tpu_custom_call.1} parent=23 // pred_fallthru
          _
        // Predicated region
        $region69: #{tpu_custom_call.1} parent=23 // pred_check
          %p535 = pneg %p391
        $region70: #{tpu_custom_call.1} parent=23 // pred_check_branch
          %537 = sbr.rel (%p535) target = $region72
        $region71: #{tpu_custom_call.1} parent=23 // pred_region
          %p538 = scmp.lt.s32.totalorder %s29, 1
          %s539 = scalar_select %p538, %s29, 1
          %s540 = scalar_lea.vmem %s13, %s539
        $region72: #{tpu_custom_call.1} parent=23 // pred_fallthru
          _
      $region24: #{tpu_custom_call.1} parent=5 // pred_fallthru
        _
      %p541 = scmp.le.s32.totalorder 1, %s21
      %p542 = scmp.lt.s32.totalorder %s21, 3
      %p543 = pnand %p541, %p542
      %p544 = pneg %p543
      // Predicated region
      $region73: #{tpu_custom_call.1} parent=5 // pred_check
        _
      $region74: #{tpu_custom_call.1} parent=5 // pred_check_branch
        %546 = sbr.rel (%p543) target = $region76
      $region75: #{tpu_custom_call.1} parent=5 // pred_region
        %s547 = ssub.s32 %s21, 1
        %s548 = smul.u32 2, %s30
        %p549 = scmp.lt.s32.totalorder %s548, 1
        %s550 = scalar_select %p549, %s548, 1
        %s551 = smul.addr %s550, 8
        %s552 = scalar_lea.vmem %s0, %s551
        %p553 = pneg %p59
        %p554 = pneg %p56
        %s555 = smul.u32 2, %s30
        %p556 = scmp.lt.s32.totalorder %s555, 1
        %s557 = scalar_select %p556, %s555, 1
        %s558 = scalar_lea.vmem %s1, %s557
        %p559 = pneg %p85
        %p560 = pneg %p82
        %p561 = scmp.lt.s32.totalorder %s31, 1
        %s562 = scalar_select %p561, %s31, 1
        %s563 = smul.addr %s562, 4
        %s564 = smul.addr %s563, 4
        %s565 = scalar_lea.vmem %s2, %s564
        %p566 = pneg %p111
        %p567 = pneg %p108
        %p568 = scmp.lt.s32.totalorder %s31, 1
        %s569 = scalar_select %p568, %s31, 1
        %s570 = smul.addr %s569, 4
        %s571 = smul.addr %s570, 4
        %s572 = scalar_lea.vmem %s3, %s571
        %p573 = pneg %p137
        %p574 = pneg %p134
        %p575 = scmp.lt.s32.totalorder %s31, 1
        %s576 = scalar_select %p575, %s31, 1
        %s577 = smul.addr %s576, 4
        %s578 = smul.addr %s577, 4
        %s579 = scalar_lea.vmem %s4, %s578
        %p580 = pneg %p163
        %p581 = pneg %p160
        %p582 = scmp.lt.s32.totalorder %s31, 1
        %s583 = scalar_select %p582, %s31, 1
        %s584 = scalar_lea.vmem %s5, %s583
        %p585 = pneg %p189
        %p586 = pneg %p186
        %p587 = scmp.lt.s32.totalorder %s31, 1
        %s588 = scalar_select %p587, %s31, 1
        %s589 = scalar_lea.vmem %s6, %s588
        %p590 = pneg %p215
        %p591 = pneg %p212
        %p592 = scmp.lt.s32.totalorder %s31, 1
        %s593 = scalar_select %p592, %s31, 1
        %s594 = scalar_lea.vmem %s7, %s593
        %p595 = pneg %p241
        %p596 = pneg %p238
        %p597 = scmp.lt.s32.totalorder %s31, 1
        %s598 = scalar_select %p597, %s31, 1
        %s599 = smul.addr %s598, 4
        %s600 = smul.addr %s599, 4
        %s601 = scalar_lea.vmem %s8, %s600
        %p602 = pneg %p267
        %p603 = pneg %p264
        %p604 = scmp.lt.s32.totalorder %s31, 1
        %s605 = scalar_select %p604, %s31, 1
        %s606 = scalar_lea.vmem %s9, %s605
        %p607 = pneg %p293
        %p608 = pneg %p290
        %p609 = scmp.lt.s32.totalorder %s31, 1
        %s610 = scalar_select %p609, %s31, 1
        %s611 = smul.addr %s610, 16
        %s612 = smul.addr %s611, 4
        %s613 = scalar_lea.vmem %s10, %s612
        %p614 = pneg %p319
        %p615 = pneg %p316
        %p616 = scmp.lt.s32.totalorder %s31, 1
        %s617 = scalar_select %p616, %s31, 1
        %s618 = scalar_lea.vmem %s11, %s617
        %p619 = pneg %p345
        %p620 = pneg %p342
        %p621 = scmp.lt.s32.totalorder %s31, 1
        %s622 = scalar_select %p621, %s31, 1
        %s623 = scalar_lea.vmem %s12, %s622
        %p624 = pneg %p371
        %p625 = pneg %p368
        %p626 = scmp.lt.s32.totalorder %s31, 1
        %s627 = scalar_select %p626, %s31, 1
        %s628 = scalar_lea.vmem %s13, %s627
        %p629 = pneg %p397
        %p630 = pneg %p394
        %p631 = pneg %p423
        %p632 = pneg %p420
        %s633 = smul.u32 2, %s30
        %p634 = scmp.lt.s32.totalorder %s633, 1
        %s635 = scalar_select %p634, %s633, 1
        %s636 = smul.addr %s635, 8
        %s637 = scalar_lea.vmem %s0, %s636
        %s638 = smul.u32 2, %s30
        %s639 = smul.u32 2, %s30
        %p640 = scmp.lt.s32.totalorder %s639, 1
        %s641 = scalar_select %p640, %s639, 1
        %s642 = scalar_lea.vmem %s1, %s641
        %s643 = smul.u32 2, %s30
        %p644 = scmp.lt.s32.totalorder %s31, 1
        %s645 = scalar_select %p644, %s31, 1
        %s646 = smul.addr %s645, 4
        %s647 = smul.addr %s646, 4
        %s648 = scalar_lea.vmem %s2, %s647
        %p649 = scmp.lt.s32.totalorder %s31, 1
        %s650 = scalar_select %p649, %s31, 1
        %s651 = smul.addr %s650, 4
        %s652 = smul.addr %s651, 4
        %s653 = scalar_lea.vmem %s3, %s652
        %p654 = scmp.lt.s32.totalorder %s31, 1
        %s655 = scalar_select %p654, %s31, 1
        %s656 = smul.addr %s655, 4
        %s657 = smul.addr %s656, 4
        %s658 = scalar_lea.vmem %s4, %s657
        %p659 = scmp.lt.s32.totalorder %s31, 1
        %s660 = scalar_select %p659, %s31, 1
        %s661 = scalar_lea.vmem %s5, %s660
        %p662 = scmp.lt.s32.totalorder %s31, 1
        %s663 = scalar_select %p662, %s31, 1
        %s664 = scalar_lea.vmem %s6, %s663
        %p665 = scmp.lt.s32.totalorder %s31, 1
        %s666 = scalar_select %p665, %s31, 1
        %s667 = scalar_lea.vmem %s7, %s666
        %p668 = scmp.lt.s32.totalorder %s31, 1
        %s669 = scalar_select %p668, %s31, 1
        %s670 = smul.addr %s669, 4
        %s671 = smul.addr %s670, 4
        %s672 = scalar_lea.vmem %s8, %s671
        %p673 = scmp.lt.s32.totalorder %s31, 1
        %s674 = scalar_select %p673, %s31, 1
        %s675 = scalar_lea.vmem %s9, %s674
        %p676 = scmp.lt.s32.totalorder %s31, 1
        %s677 = scalar_select %p676, %s31, 1
        %s678 = smul.addr %s677, 16
        %s679 = smul.addr %s678, 4
        %s680 = scalar_lea.vmem %s10, %s679
        %p681 = scmp.lt.s32.totalorder %s31, 1
        %s682 = scalar_select %p681, %s31, 1
        %s683 = scalar_lea.vmem %s11, %s682
        %p684 = scmp.lt.s32.totalorder %s31, 1
        %s685 = scalar_select %p684, %s31, 1
        %s686 = scalar_lea.vmem %s12, %s685
        %p687 = scmp.lt.s32.totalorder %s31, 1
        %s688 = scalar_select %p687, %s31, 1
        %s689 = scalar_lea.vmem %s13, %s688
        %s690 = smul.u32 2, %s30
        %p692 = scmp.eq.s32.totalorder %s31, 0
        // Predicated region
        $region77: #{tpu_custom_call.1} parent=75 // pred_check
          %p693 = pneg %p692
        $region78: #{tpu_custom_call.1} parent=75 // pred_check_branch
          %695 = sbr.rel (%p693) target = $region80
        $region79: #{tpu_custom_call.1} parent=75 // pred_region
          %v696 = vld [vmem:[%s637] sm:$0xff]
          %v697 = vld [vmem:[%s637 + $0x8] sm:$0xff]
          %vm698 = vcmask 261120
          %699 = vst.msk [vmem:[#allocation2] sm:$0xff] %vm698, %v696
          %700 = vst.msk [vmem:[#allocation2 + $0x8] sm:$0xff] %vm698, %v697
        $region80: #{tpu_custom_call.1} parent=75 // pred_fallthru
          _
        %v701 = vld [vmem:[#allocation2] sm:$0xff]
        %v702 = vld [vmem:[#allocation2 + $0x8] sm:$0xff]
        %v703 = vpack.c.bf16 %v702, %v701
        %v704 = vld [vmem:[%s648] sm:$0xf]
        %v705 = vld [vmem:[%s648 + $0x4] sm:$0xf]
        %v706 = vld [vmem:[%s648 + $0x8] sm:$0xf]
        %v707 = vld [vmem:[%s648 + $0xc] sm:$0xf]
        %v712 = vunpack.c.l.b16 %v704
        %v713 = vunpack.c.l.b16 %v705
        %v714 = vunpack.c.l.b16 %v706
        %v715 = vunpack.c.l.b16 %v707
        %v716 = vpack.c.b16 %v713, %v712
        %v717 = vpack.c.b16 %v715, %v714
        %vm720 = vcmask 261120
        %v722 = vsel %vm720, %v703, 0
        %724 = vmatprep.subr.bf16.mxu0 0
        %725 = vmatpush1.bf16.msra.mxu0 0
        %726 = vmatprep.subr.bf16.mxu0 0
        %727 = vmatpush1.bf16.msra.mxu0 0
        %728 = vmatprep.subr.bf16.mxu0 0
        %729 = vmatpush1.bf16.msra.mxu0 0
        %730 = vmatprep.subr.bf16.mxu0 0
        %731 = vmatpush1.bf16.msra.mxu0 0
        %732 = vmatprep.subr.bf16.mxu0 0
        %733 = vmatpush1.bf16.msra.mxu0 0
        %734 = vmatprep.subr.bf16.mxu0 0
        %735 = vmatpush1.bf16.msra.mxu0 0
        %736 = vmatprep.subr.bf16.mxu0 0
        %737 = vmatpush1.bf16.msra.mxu0 %v717
        %738 = vmatprep.subr.bf16.mxu0 0
        %739 = vmatpush1.bf16.msra.mxu0 %v716
        %740 = vmatprep.subr.bf16.mxu0 0
        %741 = vmatpush2.bf16.msra.mxu0 0
        %742 = vmatprep.subr.bf16.mxu0 0
        %743 = vmatpush2.bf16.msra.mxu0 0
        %744 = vmatprep.subr.bf16.mxu0 0
        %745 = vmatpush2.bf16.msra.mxu0 0
        %746 = vmatprep.subr.bf16.mxu0 0
        %747 = vmatpush2.bf16.msra.mxu0 0
        %748 = vmatprep.subr.bf16.mxu0 0
        %749 = vmatpush2.bf16.msra.mxu0 0
        %750 = vmatprep.subr.bf16.mxu0 0
        %751 = vmatpush2.bf16.msra.mxu0 0
        %752 = vmatprep.subr.bf16.mxu0 0
        %753 = vmatpush2.bf16.msra.mxu0 0
        %754 = vmatprep.subr.bf16.mxu0 0
        %755 = vmatpush2.bf16.msra.mxu0 0
        %756 = vmatprep.mubr.bf16.mxu0 0
        %757 = vmatmul.mubr.bf16.gmra.mxu0 %v722
        %v758 = vpop.f32.mrf.mxu0
        %v759 = vadd.f32 0.0, %v758
        %v760 = vpop.f32.mrf.mxu0
        %v761 = vpop.f32.mrf.mxu0
        %v762 = vadd.f32 0.0, %v761
        %v763 = vpop.f32.mrf.mxu0
        %764 = vdwg.mxu0
        %v765 = vld [vmem:[%s653] sm:$0xf]
        %v766 = vld [vmem:[%s653 + $0x4] sm:$0xf]
        %v767 = vld [vmem:[%s653 + $0x8] sm:$0xf]
        %v768 = vld [vmem:[%s653 + $0xc] sm:$0xf]
        %v773 = vunpack.c.l.b16 %v765
        %v774 = vunpack.c.l.b16 %v766
        %v775 = vunpack.c.l.b16 %v767
        %v776 = vunpack.c.l.b16 %v768
        %v777 = vpack.c.b16 %v774, %v773
        %v778 = vpack.c.b16 %v776, %v775
        %781 = vmatprep.subr.bf16.mxu0 0
        %782 = vmatpush1.bf16.msra.mxu0 0
        %783 = vmatprep.subr.bf16.mxu0 0
        %784 = vmatpush1.bf16.msra.mxu0 0
        %785 = vmatprep.subr.bf16.mxu0 0
        %786 = vmatpush1.bf16.msra.mxu0 0
        %787 = vmatprep.subr.bf16.mxu0 0
        %788 = vmatpush1.bf16.msra.mxu0 0
        %789 = vmatprep.subr.bf16.mxu0 0
        %790 = vmatpush1.bf16.msra.mxu0 0
        %791 = vmatprep.subr.bf16.mxu0 0
        %792 = vmatpush1.bf16.msra.mxu0 0
        %793 = vmatprep.subr.bf16.mxu0 0
        %794 = vmatpush1.bf16.msra.mxu0 %v778
        %795 = vmatprep.subr.bf16.mxu0 0
        %796 = vmatpush1.bf16.msra.mxu0 %v777
        %797 = vmatprep.subr.bf16.mxu0 0
        %798 = vmatpush2.bf16.msra.mxu0 0
        %799 = vmatprep.subr.bf16.mxu0 0
        %800 = vmatpush2.bf16.msra.mxu0 0
        %801 = vmatprep.subr.bf16.mxu0 0
        %802 = vmatpush2.bf16.msra.mxu0 0
        %803 = vmatprep.subr.bf16.mxu0 0
        %804 = vmatpush2.bf16.msra.mxu0 0
        %805 = vmatprep.subr.bf16.mxu0 0
        %806 = vmatpush2.bf16.msra.mxu0 0
        %807 = vmatprep.subr.bf16.mxu0 0
        %808 = vmatpush2.bf16.msra.mxu0 0
        %809 = vmatprep.subr.bf16.mxu0 0
        %810 = vmatpush2.bf16.msra.mxu0 0
        %811 = vmatprep.subr.bf16.mxu0 0
        %812 = vmatpush2.bf16.msra.mxu0 0
        %813 = vmatprep.mubr.bf16.mxu0 0
        %814 = vmatmul.mubr.bf16.gmra.mxu0 %v722
        %v815 = vpop.f32.mrf.mxu0
        %v816 = vadd.f32 0.0, %v815
        %v817 = vpop.f32.mrf.mxu0
        %v818 = vpop.f32.mrf.mxu0
        %v819 = vadd.f32 0.0, %v818
        %v820 = vpop.f32.mrf.mxu0
        %821 = vdwg.mxu0
        %v822 = vmul.f32 %v701, 0.17677669
        %v823 = vmul.f32 %v702, 0.17677669
        %826 = vrot.lane.b32.xlu0 %v822, 120
        %v827 = vpop.permute.xlu0 %826
        %828 = vrot.lane.b32.xlu0 %v823, 120
        %v829 = vpop.permute.xlu0 %828
        %832 = vrot.lane.b32.xlu0 %v822, 112
        %v833 = vpop.permute.xlu0 %832
        %834 = vrot.lane.b32.xlu0 %v823, 112
        %v835 = vpop.permute.xlu0 %834
        %838 = vrot.lane.b32.xlu0 %v822, 104
        %v839 = vpop.permute.xlu0 %838
        %840 = vrot.lane.b32.xlu0 %v823, 104
        %v841 = vpop.permute.xlu0 %840
        %v844 = vpack.c.bf16 %v822, %v822
        %v845 = vpack.c.bf16 %v823, %v823
        %v846 = vpack.c.bf16 %v827, %v827
        %v847 = vpack.c.bf16 %v829, %v829
        %v848 = vpack.c.bf16 %v833, %v833
        %v849 = vpack.c.bf16 %v835, %v835
        %v850 = vpack.c.bf16 %v839, %v839
        %v851 = vpack.c.bf16 %v841, %v841
        %854 = vrot.lane.b32.xlu0 %v816, 120
        %v855 = vpop.permute.xlu0 %854
        %856 = vrot.lane.b32.xlu0 %v819, 120
        %v857 = vpop.permute.xlu0 %856
        %860 = vrot.lane.b32.xlu0 %v816, 112
        %v861 = vpop.permute.xlu0 %860
        %862 = vrot.lane.b32.xlu0 %v819, 112
        %v863 = vpop.permute.xlu0 %862
        %866 = vrot.lane.b32.xlu0 %v816, 104
        %v867 = vpop.permute.xlu0 %866
        %868 = vrot.lane.b32.xlu0 %v819, 104
        %v869 = vpop.permute.xlu0 %868
        %v872 = vpack.c.bf16 %v816, %v816
        %v873 = vpack.c.bf16 %v819, %v819
        %v874 = vpack.c.bf16 %v855, %v855
        %v875 = vpack.c.bf16 %v857, %v857
        %v876 = vpack.c.bf16 %v861, %v861
        %v877 = vpack.c.bf16 %v863, %v863
        %v878 = vpack.c.bf16 %v867, %v867
        %v879 = vpack.c.bf16 %v869, %v869
        %882 = vrot.lane.b32.xlu0 %v759, 120
        %v883 = vpop.permute.xlu0 %882
        %884 = vrot.lane.b32.xlu0 %v762, 120
        %v885 = vpop.permute.xlu0 %884
        %888 = vrot.lane.b32.xlu0 %v759, 112
        %v889 = vpop.permute.xlu0 %888
        %890 = vrot.lane.b32.xlu0 %v762, 112
        %v891 = vpop.permute.xlu0 %890
        %894 = vrot.lane.b32.xlu0 %v759, 104
        %v895 = vpop.permute.xlu0 %894
        %896 = vrot.lane.b32.xlu0 %v762, 104
        %v897 = vpop.permute.xlu0 %896
        %v900 = vpack.c.bf16 %v759, %v759
        %v901 = vpack.c.bf16 %v762, %v762
        %v902 = vpack.c.bf16 %v883, %v883
        %v903 = vpack.c.bf16 %v885, %v885
        %v904 = vpack.c.bf16 %v889, %v889
        %v905 = vpack.c.bf16 %v891, %v891
        %v906 = vpack.c.bf16 %v895, %v895
        %v907 = vpack.c.bf16 %v897, %v897
        %vm908 = vcmask 64512
        %v910 = vsel %vm908, %v844, 0
        %v913 = vsel %vm908, %v872, 0
        %915 = vmatprep.subr.bf16.mxu0 0
        %916 = vmatpush1.bf16.xpose.msra.mxu0 0
        %917 = vmatprep.subr.bf16.mxu0 0
        %918 = vmatpush1.bf16.xpose.msra.mxu0 0
        %919 = vmatprep.subr.bf16.mxu0 0
        %920 = vmatpush1.bf16.xpose.msra.mxu0 0
        %921 = vmatprep.subr.bf16.mxu0 0
        %922 = vmatpush1.bf16.xpose.msra.mxu0 0
        %923 = vmatprep.subr.bf16.mxu0 0
        %924 = vmatpush1.bf16.xpose.msra.mxu0 0
        %925 = vmatprep.subr.bf16.mxu0 0
        %926 = vmatpush1.bf16.xpose.msra.mxu0 0
        %927 = vmatprep.subr.bf16.mxu0 0
        %928 = vmatpush1.bf16.xpose.msra.mxu0 0
        %929 = vmatprep.subr.bf16.mxu0 0
        %930 = vmatpush1.bf16.xpose.msra.mxu0 %v913
        %931 = vmatprep.subr.bf16.mxu0 0
        %932 = vmatpush2.bf16.xpose.msra.mxu0 0
        %933 = vmatprep.subr.bf16.mxu0 0
        %934 = vmatpush2.bf16.xpose.msra.mxu0 0
        %935 = vmatprep.subr.bf16.mxu0 0
        %936 = vmatpush2.bf16.xpose.msra.mxu0 0
        %937 = vmatprep.subr.bf16.mxu0 0
        %938 = vmatpush2.bf16.xpose.msra.mxu0 0
        %939 = vmatprep.subr.bf16.mxu0 0
        %940 = vmatpush2.bf16.xpose.msra.mxu0 0
        %941 = vmatprep.subr.bf16.mxu0 0
        %942 = vmatpush2.bf16.xpose.msra.mxu0 0
        %943 = vmatprep.subr.bf16.mxu0 0
        %944 = vmatpush2.bf16.xpose.msra.mxu0 0
        %945 = vmatprep.subr.bf16.mxu0 0
        %946 = vmatpush2.bf16.xpose.msra.mxu0 0
        %947 = vmatprep.mubr.bf16.mxu0 0
        %948 = vmatmul.mubr.bf16.gmra.mxu0 %v910
        %v949 = vpop.f32.mrf.mxu0
        %v950 = vadd.f32 0.0, %v949
        %v951 = vpop.f32.mrf.mxu0
        %v952 = vpop.f32.mrf.mxu0
        %v953 = vpop.f32.mrf.mxu0
        %954 = vdwg.mxu0
        %v956 = vsel %vm908, %v845, 0
        %v959 = vsel %vm908, %v873, 0
        %961 = vmatprep.subr.bf16.mxu0 0
        %962 = vmatpush1.bf16.xpose.msra.mxu0 0
        %963 = vmatprep.subr.bf16.mxu0 0
        %964 = vmatpush1.bf16.xpose.msra.mxu0 0
        %965 = vmatprep.subr.bf16.mxu0 0
        %966 = vmatpush1.bf16.xpose.msra.mxu0 0
        %967 = vmatprep.subr.bf16.mxu0 0
        %968 = vmatpush1.bf16.xpose.msra.mxu0 0
        %969 = vmatprep.subr.bf16.mxu0 0
        %970 = vmatpush1.bf16.xpose.msra.mxu0 0
        %971 = vmatprep.subr.bf16.mxu0 0
        %972 = vmatpush1.bf16.xpose.msra.mxu0 0
        %973 = vmatprep.subr.bf16.mxu0 0
        %974 = vmatpush1.bf16.xpose.msra.mxu0 0
        %975 = vmatprep.subr.bf16.mxu0 0
        %976 = vmatpush1.bf16.xpose.msra.mxu0 %v959
        %977 = vmatprep.subr.bf16.mxu0 0
        %978 = vmatpush2.bf16.xpose.msra.mxu0 0
        %979 = vmatprep.subr.bf16.mxu0 0
        %980 = vmatpush2.bf16.xpose.msra.mxu0 0
        %981 = vmatprep.subr.bf16.mxu0 0
        %982 = vmatpush2.bf16.xpose.msra.mxu0 0
        %983 = vmatprep.subr.bf16.mxu0 0
        %984 = vmatpush2.bf16.xpose.msra.mxu0 0
        %985 = vmatprep.subr.bf16.mxu0 0
        %986 = vmatpush2.bf16.xpose.msra.mxu0 0
        %987 = vmatprep.subr.bf16.mxu0 0
        %988 = vmatpush2.bf16.xpose.msra.mxu0 0
        %989 = vmatprep.subr.bf16.mxu0 0
        %990 = vmatpush2.bf16.xpose.msra.mxu0 0
        %991 = vmatprep.subr.bf16.mxu0 0
        %992 = vmatpush2.bf16.xpose.msra.mxu0 0
        %993 = vmatprep.mubr.bf16.mxu0 0
        %994 = vmatmul.mubr.bf16.gmra.mxu0 %v956
        %v995 = vpop.f32.mrf.mxu0
        %v996 = vadd.f32 0.0, %v995
        %v997 = vpop.f32.mrf.mxu0
        %v998 = vpop.f32.mrf.mxu0
        %v999 = vpop.f32.mrf.mxu0
        %1000 = vdwg.mxu0
        %v1002 = vsel %vm908, %v846, 0
        %v1005 = vsel %vm908, %v874, 0
        %1007 = vmatprep.subr.bf16.mxu0 0
        %1008 = vmatpush1.bf16.xpose.msra.mxu0 0
        %1009 = vmatprep.subr.bf16.mxu0 0
        %1010 = vmatpush1.bf16.xpose.msra.mxu0 0
        %1011 = vmatprep.subr.bf16.mxu0 0
        %1012 = vmatpush1.bf16.xpose.msra.mxu0 0
        %1013 = vmatprep.subr.bf16.mxu0 0
        %1014 = vmatpush1.bf16.xpose.msra.mxu0 0
        %1015 = vmatprep.subr.bf16.mxu0 0
        %1016 = vmatpush1.bf16.xpose.msra.mxu0 0
        %1017 = vmatprep.subr.bf16.mxu0 0
        %1018 = vmatpush1.bf16.xpose.msra.mxu0 0
        %1019 = vmatprep.subr.bf16.mxu0 0
        %1020 = vmatpush1.bf16.xpose.msra.mxu0 0
        %1021 = vmatprep.subr.bf16.mxu0 0
        %1022 = vmatpush1.bf16.xpose.msra.mxu0 %v1005
        %1023 = vmatprep.subr.bf16.mxu0 0
        %1024 = vmatpush2.bf16.xpose.msra.mxu0 0
        %1025 = vmatprep.subr.bf16.mxu0 0
        %1026 = vmatpush2.bf16.xpose.msra.mxu0 0
        %1027 = vmatprep.subr.bf16.mxu0 0
        %1028 = vmatpush2.bf16.xpose.msra.mxu0 0
        %1029 = vmatprep.subr.bf16.mxu0 0
        %1030 = vmatpush2.bf16.xpose.msra.mxu0 0
        %1031 = vmatprep.subr.bf16.mxu0 0
        %1032 = vmatpush2.bf16.xpose.msra.mxu0 0
        %1033 = vmatprep.subr.bf16.mxu0 0
        %1034 = vmatpush2.bf16.xpose.msra.mxu0 0
        %1035 = vmatprep.subr.bf16.mxu0 0
        %1036 = vmatpush2.bf16.xpose.msra.mxu0 0
        %1037 = vmatprep.subr.bf16.mxu0 0
        %1038 = vmatpush2.bf16.xpose.msra.mxu0 0
        %1039 = vmatprep.mubr.bf16.mxu0 0
        %1040 = vmatmul.mubr.bf16.gmra.mxu0 %v1002
        %v1041 = vpop.f32.mrf.mxu0
        %v1042 = vadd.f32 0.0, %v1041
        %v1043 = vpop.f32.mrf.mxu0
        %v1044 = vpop.f32.mrf.mxu0
        %v1045 = vpop.f32.mrf.mxu0
        %1046 = vdwg.mxu0
        %v1048 = vsel %vm908, %v847, 0
        %v1051 = vsel %vm908, %v875, 0
        %1053 = vmatprep.subr.bf16.mxu0 0
        %1054 = vmatpush1.bf16.xpose.msra.mxu0 0
        %1055 = vmatprep.subr.bf16.mxu0 0
        %1056 = vmatpush1.bf16.xpose.msra.mxu0 0
        %1057 = vmatprep.subr.bf16.mxu0 0
        %1058 = vmatpush1.bf16.xpose.msra.mxu0 0
        %1059 = vmatprep.subr.bf16.mxu0 0
        %1060 = vmatpush1.bf16.xpose.msra.mxu0 0
        %1061 = vmatprep.subr.bf16.mxu0 0
        %1062 = vmatpush1.bf16.xpose.msra.mxu0 0
        %1063 = vmatprep.subr.bf16.mxu0 0
        %1064 = vmatpush1.bf16.xpose.msra.mxu0 0
        %1065 = vmatprep.subr.bf16.mxu0 0
        %1066 = vmatpush1.bf16.xpose.msra.mxu0 0
        %1067 = vmatprep.subr.bf16.mxu0 0
        %1068 = vmatpush1.bf16.xpose.msra.mxu0 %v1051
        %1069 = vmatprep.subr.bf16.mxu0 0
        %1070 = vmatpush2.bf16.xpose.msra.mxu0 0
        %1071 = vmatprep.subr.bf16.mxu0 0
        %1072 = vmatpush2.bf16.xpose.msra.mxu0 0
        %1073 = vmatprep.subr.bf16.mxu0 0
        %1074 = vmatpush2.bf16.xpose.msra.mxu0 0
        %1075 = vmatprep.subr.bf16.mxu0 0
        %1076 = vmatpush2.bf16.xpose.msra.mxu0 0
        %1077 = vmatprep.subr.bf16.mxu0 0
        %1078 = vmatpush2.bf16.xpose.msra.mxu0 0
        %1079 = vmatprep.subr.bf16.mxu0 0
        %1080 = vmatpush2.bf16.xpose.msra.mxu0 0
        %1081 = vmatprep.subr.bf16.mxu0 0
        %1082 = vmatpush2.bf16.xpose.msra.mxu0 0
        %1083 = vmatprep.subr.bf16.mxu0 0
        %1084 = vmatpush2.bf16.xpose.msra.mxu0 0
        %1085 = vmatprep.mubr.bf16.mxu0 0
        %1086 = vmatmul.mubr.bf16.gmra.mxu0 %v1048
        %v1087 = vpop.f32.mrf.mxu0
        %v1088 = vadd.f32 0.0, %v1087
        %v1089 = vpop.f32.mrf.mxu0
        %v1090 = vpop.f32.mrf.mxu0
        %v1091 = vpop.f32.mrf.mxu0
        %1092 = vdwg.mxu0
        %v1094 = vsel %vm908, %v848, 0
        %v1097 = vsel %vm908, %v876, 0
        %1099 = vmatprep.subr.bf16.mxu0 0
        %1100 = vmatpush1.bf16.xpose.msra.mxu0 0
        %1101 = vmatprep.subr.bf16.mxu0 0
        %1102 = vmatpush1.bf16.xpose.msra.mxu0 0
        %1103 = vmatprep.subr.bf16.mxu0 0
        %1104 = vmatpush1.bf16.xpose.msra.mxu0 0
        %1105 = vmatprep.subr.bf16.mxu0 0
        %1106 = vmatpush1.bf16.xpose.msra.mxu0 0
        %1107 = vmatprep.subr.bf16.mxu0 0
        %1108 = vmatpush1.bf16.xpose.msra.mxu0 0
        %1109 = vmatprep.subr.bf16.mxu0 0
        %1110 = vmatpush1.bf16.xpose.msra.mxu0 0
        %1111 = vmatprep.subr.bf16.mxu0 0
        %1112 = vmatpush1.bf16.xpose.msra.mxu0 0
        %1113 = vmatprep.subr.bf16.mxu0 0
        %1114 = vmatpush1.bf16.xpose.msra.mxu0 %v1097
        %1115 = vmatprep.subr.bf16.mxu0 0
        %1116 = vmatpush2.bf16.xpose.msra.mxu0 0
        %1117 = vmatprep.subr.bf16.mxu0 0
        %1118 = vmatpush2.bf16.xpose.msra.mxu0 0
        %1119 = vmatprep.subr.bf16.mxu0 0
        %1120 = vmatpush2.bf16.xpose.msra.mxu0 0
        %1121 = vmatprep.subr.bf16.mxu0 0
        %1122 = vmatpush2.bf16.xpose.msra.mxu0 0
        %1123 = vmatprep.subr.bf16.mxu0 0
        %1124 = vmatpush2.bf16.xpose.msra.mxu0 0
        %1125 = vmatprep.subr.bf16.mxu0 0
        %1126 = vmatpush2.bf16.xpose.msra.mxu0 0
        %1127 = vmatprep.subr.bf16.mxu0 0
        %1128 = vmatpush2.bf16.xpose.msra.mxu0 0
        %1129 = vmatprep.subr.bf16.mxu0 0
        %1130 = vmatpush2.bf16.xpose.msra.mxu0 0
        %1131 = vmatprep.mubr.bf16.mxu0 0
        %1132 = vmatmul.mubr.bf16.gmra.mxu0 %v1094
        %v1133 = vpop.f32.mrf.mxu0
        %v1134 = vadd.f32 0.0, %v1133
        %v1135 = vpop.f32.mrf.mxu0
        %v1136 = vpop.f32.mrf.mxu0
        %v1137 = vpop.f32.mrf.mxu0
        %1138 = vdwg.mxu0
        %v1140 = vsel %vm908, %v849, 0
        %v1143 = vsel %vm908, %v877, 0
        %1145 = vmatprep.subr.bf16.mxu0 0
        %1146 = vmatpush1.bf16.xpose.msra.mxu0 0
        %1147 = vmatprep.subr.bf16.mxu0 0
        %1148 = vmatpush1.bf16.xpose.msra.mxu0 0
        %1149 = vmatprep.subr.bf16.mxu0 0
        %1150 = vmatpush1.bf16.xpose.msra.mxu0 0
        %1151 = vmatprep.subr.bf16.mxu0 0
        %1152 = vmatpush1.bf16.xpose.msra.mxu0 0
        %1153 = vmatprep.subr.bf16.mxu0 0
        %1154 = vmatpush1.bf16.xpose.msra.mxu0 0
        %1155 = vmatprep.subr.bf16.mxu0 0
        %1156 = vmatpush1.bf16.xpose.msra.mxu0 0
        %1157 = vmatprep.subr.bf16.mxu0 0
        %1158 = vmatpush1.bf16.xpose.msra.mxu0 0
        %1159 = vmatprep.subr.bf16.mxu0 0
        %1160 = vmatpush1.bf16.xpose.msra.mxu0 %v1143
        %1161 = vmatprep.subr.bf16.mxu0 0
        %1162 = vmatpush2.bf16.xpose.msra.mxu0 0
        %1163 = vmatprep.subr.bf16.mxu0 0
        %1164 = vmatpush2.bf16.xpose.msra.mxu0 0
        %1165 = vmatprep.subr.bf16.mxu0 0
        %1166 = vmatpush2.bf16.xpose.msra.mxu0 0
        %1167 = vmatprep.subr.bf16.mxu0 0
        %1168 = vmatpush2.bf16.xpose.msra.mxu0 0
        %1169 = vmatprep.subr.bf16.mxu0 0
        %1170 = vmatpush2.bf16.xpose.msra.mxu0 0
        %1171 = vmatprep.subr.bf16.mxu0 0
        %1172 = vmatpush2.bf16.xpose.msra.mxu0 0
        %1173 = vmatprep.subr.bf16.mxu0 0
        %1174 = vmatpush2.bf16.xpose.msra.mxu0 0
        %1175 = vmatprep.subr.bf16.mxu0 0
        %1176 = vmatpush2.bf16.xpose.msra.mxu0 0
        %1177 = vmatprep.mubr.bf16.mxu0 0
        %1178 = vmatmul.mubr.bf16.gmra.mxu0 %v1140
        %v1179 = vpop.f32.mrf.mxu0
        %v1180 = vadd.f32 0.0, %v1179
        %v1181 = vpop.f32.mrf.mxu0
        %v1182 = vpop.f32.mrf.mxu0
        %v1183 = vpop.f32.mrf.mxu0
        %1184 = vdwg.mxu0
        %v1186 = vsel %vm908, %v850, 0
        %v1189 = vsel %vm908, %v878, 0
        %1191 = vmatprep.subr.bf16.mxu0 0
        %1192 = vmatpush1.bf16.xpose.msra.mxu0 0
        %1193 = vmatprep.subr.bf16.mxu0 0
        %1194 = vmatpush1.bf16.xpose.msra.mxu0 0
        %1195 = vmatprep.subr.bf16.mxu0 0
        %1196 = vmatpush1.bf16.xpose.msra.mxu0 0
        %1197 = vmatprep.subr.bf16.mxu0 0
        %1198 = vmatpush1.bf16.xpose.msra.mxu0 0
        %1199 = vmatprep.subr.bf16.mxu0 0
        %1200 = vmatpush1.bf16.xpose.msra.mxu0 0
        %1201 = vmatprep.subr.bf16.mxu0 0
        %1202 = vmatpush1.bf16.xpose.msra.mxu0 0
        %1203 = vmatprep.subr.bf16.mxu0 0
        %1204 = vmatpush1.bf16.xpose.msra.mxu0 0
        %1205 = vmatprep.subr.bf16.mxu0 0
        %1206 = vmatpush1.bf16.xpose.msra.mxu0 %v1189
        %1207 = vmatprep.subr.bf16.mxu0 0
        %1208 = vmatpush2.bf16.xpose.msra.mxu0 0
        %1209 = vmatprep.subr.bf16.mxu0 0
        %1210 = vmatpush2.bf16.xpose.msra.mxu0 0
        %1211 = vmatprep.subr.bf16.mxu0 0
        %1212 = vmatpush2.bf16.xpose.msra.mxu0 0
        %1213 = vmatprep.subr.bf16.mxu0 0
        %1214 = vmatpush2.bf16.xpose.msra.mxu0 0
        %1215 = vmatprep.subr.bf16.mxu0 0
        %1216 = vmatpush2.bf16.xpose.msra.mxu0 0
        %1217 = vmatprep.subr.bf16.mxu0 0
        %1218 = vmatpush2.bf16.xpose.msra.mxu0 0
        %1219 = vmatprep.subr.bf16.mxu0 0
        %1220 = vmatpush2.bf16.xpose.msra.mxu0 0
        %1221 = vmatprep.subr.bf16.mxu0 0
        %1222 = vmatpush2.bf16.xpose.msra.mxu0 0
        %1223 = vmatprep.mubr.bf16.mxu0 0
        %1224 = vmatmul.mubr.bf16.gmra.mxu0 %v1186
        %v1225 = vpop.f32.mrf.mxu0
        %v1226 = vadd.f32 0.0, %v1225
        %v1227 = vpop.f32.mrf.mxu0
        %v1228 = vpop.f32.mrf.mxu0
        %v1229 = vpop.f32.mrf.mxu0
        %1230 = vdwg.mxu0
        %v1232 = vsel %vm908, %v851, 0
        %v1235 = vsel %vm908, %v879, 0
        %1237 = vmatprep.subr.bf16.mxu0 0
        %1238 = vmatpush1.bf16.xpose.msra.mxu0 0
        %1239 = vmatprep.subr.bf16.mxu0 0
        %1240 = vmatpush1.bf16.xpose.msra.mxu0 0
        %1241 = vmatprep.subr.bf16.mxu0 0
        %1242 = vmatpush1.bf16.xpose.msra.mxu0 0
        %1243 = vmatprep.subr.bf16.mxu0 0
        %1244 = vmatpush1.bf16.xpose.msra.mxu0 0
        %1245 = vmatprep.subr.bf16.mxu0 0
        %1246 = vmatpush1.bf16.xpose.msra.mxu0 0
        %1247 = vmatprep.subr.bf16.mxu0 0
        %1248 = vmatpush1.bf16.xpose.msra.mxu0 0
        %1249 = vmatprep.subr.bf16.mxu0 0
        %1250 = vmatpush1.bf16.xpose.msra.mxu0 0
        %1251 = vmatprep.subr.bf16.mxu0 0
        %1252 = vmatpush1.bf16.xpose.msra.mxu0 %v1235
        %1253 = vmatprep.subr.bf16.mxu0 0
        %1254 = vmatpush2.bf16.xpose.msra.mxu0 0
        %1255 = vmatprep.subr.bf16.mxu0 0
        %1256 = vmatpush2.bf16.xpose.msra.mxu0 0
        %1257 = vmatprep.subr.bf16.mxu0 0
        %1258 = vmatpush2.bf16.xpose.msra.mxu0 0
        %1259 = vmatprep.subr.bf16.mxu0 0
        %1260 = vmatpush2.bf16.xpose.msra.mxu0 0
        %1261 = vmatprep.subr.bf16.mxu0 0
        %1262 = vmatpush2.bf16.xpose.msra.mxu0 0
        %1263 = vmatprep.subr.bf16.mxu0 0
        %1264 = vmatpush2.bf16.xpose.msra.mxu0 0
        %1265 = vmatprep.subr.bf16.mxu0 0
        %1266 = vmatpush2.bf16.xpose.msra.mxu0 0
        %1267 = vmatprep.subr.bf16.mxu0 0
        %1268 = vmatpush2.bf16.xpose.msra.mxu0 0
        %1269 = vmatprep.mubr.bf16.mxu0 0
        %1270 = vmatmul.mubr.bf16.gmra.mxu0 %v1232
        %v1271 = vpop.f32.mrf.mxu0
        %v1272 = vadd.f32 0.0, %v1271
        %v1273 = vpop.f32.mrf.mxu0
        %v1274 = vpop.f32.mrf.mxu0
        %v1275 = vpop.f32.mrf.mxu0
        %1276 = vdwg.mxu0
        %v1277 = vld [vmem:[%s642] sm:$0x1]
        %v1278 = vld [vmem:[%s642 + $0x1] sm:$0x1]
        %v1281 = vlaneseq
        %v1282 = vshrl.u32 %v1281, 7
        %v1283 = vsub.s32 0, %v1282
        %v1284 = vrot.slane %v1277, %v1283
        %v1285 = vlaneseq
        %v1286 = vshrl.u32 %v1285, 7
        %v1287 = vsub.s32 0, %v1286
        %v1288 = vrot.slane %v1278, %v1287
        %v1291 = vadd.f32 %v950, %v1284
        %v1292 = vadd.f32 %v996, %v1288
        %v1293 = vadd.f32 %v1042, %v1284
        %v1294 = vadd.f32 %v1088, %v1288
        %v1295 = vadd.f32 %v1134, %v1284
        %v1296 = vadd.f32 %v1180, %v1288
        %v1297 = vadd.f32 %v1226, %v1284
        %v1298 = vadd.f32 %v1272, %v1288
        %v1299 = vsel %vm908, %v1291, -inf
        %1300 = vmax.xlane.f32.xlu0 %v1299
        %v1301 = vpop.xlane.xlu0 %1300
        %v1302 = vsel %vm908, %v1292, -inf
        %1303 = vmax.xlane.f32.xlu0 %v1302
        %v1304 = vpop.xlane.xlu0 %1303
        %v1305 = vsel %vm908, %v1293, -inf
        %1306 = vmax.xlane.f32.xlu0 %v1305
        %v1307 = vpop.xlane.xlu0 %1306
        %v1308 = vsel %vm908, %v1294, -inf
        %1309 = vmax.xlane.f32.xlu0 %v1308
        %v1310 = vpop.xlane.xlu0 %1309
        %v1311 = vsel %vm908, %v1295, -inf
        %1312 = vmax.xlane.f32.xlu0 %v1311
        %v1313 = vpop.xlane.xlu0 %1312
        %v1314 = vsel %vm908, %v1296, -inf
        %1315 = vmax.xlane.f32.xlu0 %v1314
        %v1316 = vpop.xlane.xlu0 %1315
        %v1317 = vsel %vm908, %v1297, -inf
        %1318 = vmax.xlane.f32.xlu0 %v1317
        %v1319 = vpop.xlane.xlu0 %1318
        %v1320 = vsel %vm908, %v1298, -inf
        %1321 = vmax.xlane.f32.xlu0 %v1320
        %v1322 = vpop.xlane.xlu0 %1321
        %v1323 = vsub.f32 %v1291, %v1301
        %v1324 = vsub.f32 %v1292, %v1304
        %v1325 = vsub.f32 %v1293, %v1307
        %v1326 = vsub.f32 %v1294, %v1310
        %v1327 = vsub.f32 %v1295, %v1313
        %v1328 = vsub.f32 %v1296, %v1316
        %v1329 = vsub.f32 %v1297, %v1319
        %v1330 = vsub.f32 %v1298, %v1322
        %v1331 = vmul.f32 %v1323, 1.442695
        %v1332 = vpow.pop %v1331
        %v1333 = vmul.f32 %v1324, 1.442695
        %v1334 = vpow.pop %v1333
        %v1335 = vmul.f32 %v1325, 1.442695
        %v1336 = vpow.pop %v1335
        %v1337 = vmul.f32 %v1326, 1.442695
        %v1338 = vpow.pop %v1337
        %v1339 = vmul.f32 %v1327, 1.442695
        %v1340 = vpow.pop %v1339
        %v1341 = vmul.f32 %v1328, 1.442695
        %v1342 = vpow.pop %v1341
        %v1343 = vmul.f32 %v1329, 1.442695
        %v1344 = vpow.pop %v1343
        %v1345 = vmul.f32 %v1330, 1.442695
        %v1346 = vpow.pop %v1345
        %v1347 = vsel %vm908, %v1332, 0.0
        %1348 = vadd.xlane.f32.xlu0 %v1347
        %v1349 = vpop.xlane.xlu0 %1348
        %v1350 = vsel %vm908, %v1334, 0.0
        %1351 = vadd.xlane.f32.xlu0 %v1350
        %v1352 = vpop.xlane.xlu0 %1351
        %v1353 = vsel %vm908, %v1336, 0.0
        %1354 = vadd.xlane.f32.xlu0 %v1353
        %v1355 = vpop.xlane.xlu0 %1354
        %v1356 = vsel %vm908, %v1338, 0.0
        %1357 = vadd.xlane.f32.xlu0 %v1356
        %v1358 = vpop.xlane.xlu0 %1357
        %v1359 = vsel %vm908, %v1340, 0.0
        %1360 = vadd.xlane.f32.xlu0 %v1359
        %v1361 = vpop.xlane.xlu0 %1360
        %v1362 = vsel %vm908, %v1342, 0.0
        %1363 = vadd.xlane.f32.xlu0 %v1362
        %v1364 = vpop.xlane.xlu0 %1363
        %v1365 = vsel %vm908, %v1344, 0.0
        %1366 = vadd.xlane.f32.xlu0 %v1365
        %v1367 = vpop.xlane.xlu0 %1366
        %v1368 = vsel %vm908, %v1346, 0.0
        %1369 = vadd.xlane.f32.xlu0 %v1368
        %v1370 = vpop.xlane.xlu0 %1369
        %v1371 = vpack.c.bf16 %v1332, %v1332
        %v1372 = vpack.c.bf16 %v1334, %v1334
        %v1373 = vpack.c.bf16 %v1336, %v1336
        %v1374 = vpack.c.bf16 %v1338, %v1338
        %v1375 = vpack.c.bf16 %v1340, %v1340
        %v1376 = vpack.c.bf16 %v1342, %v1342
        %v1377 = vpack.c.bf16 %v1344, %v1344
        %v1378 = vpack.c.bf16 %v1346, %v1346
        %v1380 = vsel %vm908, %v1371, 0
        %vm1382 = vcmask 1043456
        %v1384 = vsel %vm1382, %v900, 0
        %1386 = vmatprep.subr.bf16.mxu0 0
        %1387 = vmatpush1.bf16.msra.mxu0 0
        %1388 = vmatprep.subr.bf16.mxu0 0
        %1389 = vmatpush1.bf16.msra.mxu0 0
        %1390 = vmatprep.subr.bf16.mxu0 0
        %1391 = vmatpush1.bf16.msra.mxu0 0
        %1392 = vmatprep.subr.bf16.mxu0 0
        %1393 = vmatpush1.bf16.msra.mxu0 0
        %1394 = vmatprep.subr.bf16.mxu0 0
        %1395 = vmatpush1.bf16.msra.mxu0 0
        %1396 = vmatprep.subr.bf16.mxu0 0
        %1397 = vmatpush1.bf16.msra.mxu0 0
        %1398 = vmatprep.subr.bf16.mxu0 0
        %1399 = vmatpush1.bf16.msra.mxu0 0
        %1400 = vmatprep.subr.bf16.mxu0 0
        %1401 = vmatpush1.bf16.msra.mxu0 %v1384
        %1402 = vmatprep.subr.bf16.mxu0 0
        %1403 = vmatpush2.bf16.msra.mxu0 0
        %1404 = vmatprep.subr.bf16.mxu0 0
        %1405 = vmatpush2.bf16.msra.mxu0 0
        %1406 = vmatprep.subr.bf16.mxu0 0
        %1407 = vmatpush2.bf16.msra.mxu0 0
        %1408 = vmatprep.subr.bf16.mxu0 0
        %1409 = vmatpush2.bf16.msra.mxu0 0
        %1410 = vmatprep.subr.bf16.mxu0 0
        %1411 = vmatpush2.bf16.msra.mxu0 0
        %1412 = vmatprep.subr.bf16.mxu0 0
        %1413 = vmatpush2.bf16.msra.mxu0 0
        %1414 = vmatprep.subr.bf16.mxu0 0
        %1415 = vmatpush2.bf16.msra.mxu0 0
        %1416 = vmatprep.subr.bf16.mxu0 0
        %1417 = vmatpush2.bf16.msra.mxu0 0
        %1418 = vmatprep.mubr.bf16.mxu0 0
        %1419 = vmatmul.mubr.bf16.gmra.mxu0 %v1380
        %v1420 = vpop.f32.mrf.mxu0
        %v1421 = vadd.f32 0.0, %v1420
        %v1422 = vpop.f32.mrf.mxu0
        %v1423 = vpop.f32.mrf.mxu0
        %v1424 = vpop.f32.mrf.mxu0
        %1425 = vdwg.mxu0
        %v1427 = vsel %vm908, %v1372, 0
        %v1430 = vsel %vm1382, %v901, 0
        %1432 = vmatprep.subr.bf16.mxu0 0
        %1433 = vmatpush1.bf16.msra.mxu0 0
        %1434 = vmatprep.subr.bf16.mxu0 0
        %1435 = vmatpush1.bf16.msra.mxu0 0
        %1436 = vmatprep.subr.bf16.mxu0 0
        %1437 = vmatpush1.bf16.msra.mxu0 0
        %1438 = vmatprep.subr.bf16.mxu0 0
        %1439 = vmatpush1.bf16.msra.mxu0 0
        %1440 = vmatprep.subr.bf16.mxu0 0
        %1441 = vmatpush1.bf16.msra.mxu0 0
        %1442 = vmatprep.subr.bf16.mxu0 0
        %1443 = vmatpush1.bf16.msra.mxu0 0
        %1444 = vmatprep.subr.bf16.mxu0 0
        %1445 = vmatpush1.bf16.msra.mxu0 0
        %1446 = vmatprep.subr.bf16.mxu0 0
        %1447 = vmatpush1.bf16.msra.mxu0 %v1430
        %1448 = vmatprep.subr.bf16.mxu0 0
        %1449 = vmatpush2.bf16.msra.mxu0 0
        %1450 = vmatprep.subr.bf16.mxu0 0
        %1451 = vmatpush2.bf16.msra.mxu0 0
        %1452 = vmatprep.subr.bf16.mxu0 0
        %1453 = vmatpush2.bf16.msra.mxu0 0
        %1454 = vmatprep.subr.bf16.mxu0 0
        %1455 = vmatpush2.bf16.msra.mxu0 0
        %1456 = vmatprep.subr.bf16.mxu0 0
        %1457 = vmatpush2.bf16.msra.mxu0 0
        %1458 = vmatprep.subr.bf16.mxu0 0
        %1459 = vmatpush2.bf16.msra.mxu0 0
        %1460 = vmatprep.subr.bf16.mxu0 0
        %1461 = vmatpush2.bf16.msra.mxu0 0
        %1462 = vmatprep.subr.bf16.mxu0 0
        %1463 = vmatpush2.bf16.msra.mxu0 0
        %1464 = vmatprep.mubr.bf16.mxu0 0
        %1465 = vmatmul.mubr.bf16.gmra.mxu0 %v1427
        %v1466 = vpop.f32.mrf.mxu0
        %v1467 = vadd.f32 0.0, %v1466
        %v1468 = vpop.f32.mrf.mxu0
        %v1469 = vpop.f32.mrf.mxu0
        %v1470 = vpop.f32.mrf.mxu0
        %1471 = vdwg.mxu0
        %v1473 = vsel %vm908, %v1373, 0
        %v1476 = vsel %vm1382, %v902, 0
        %1478 = vmatprep.subr.bf16.mxu0 0
        %1479 = vmatpush1.bf16.msra.mxu0 0
        %1480 = vmatprep.subr.bf16.mxu0 0
        %1481 = vmatpush1.bf16.msra.mxu0 0
        %1482 = vmatprep.subr.bf16.mxu0 0
        %1483 = vmatpush1.bf16.msra.mxu0 0
        %1484 = vmatprep.subr.bf16.mxu0 0
        %1485 = vmatpush1.bf16.msra.mxu0 0
        %1486 = vmatprep.subr.bf16.mxu0 0
        %1487 = vmatpush1.bf16.msra.mxu0 0
        %1488 = vmatprep.subr.bf16.mxu0 0
        %1489 = vmatpush1.bf16.msra.mxu0 0
        %1490 = vmatprep.subr.bf16.mxu0 0
        %1491 = vmatpush1.bf16.msra.mxu0 0
        %1492 = vmatprep.subr.bf16.mxu0 0
        %1493 = vmatpush1.bf16.msra.mxu0 %v1476
        %1494 = vmatprep.subr.bf16.mxu0 0
        %1495 = vmatpush2.bf16.msra.mxu0 0
        %1496 = vmatprep.subr.bf16.mxu0 0
        %1497 = vmatpush2.bf16.msra.mxu0 0
        %1498 = vmatprep.subr.bf16.mxu0 0
        %1499 = vmatpush2.bf16.msra.mxu0 0
        %1500 = vmatprep.subr.bf16.mxu0 0
        %1501 = vmatpush2.bf16.msra.mxu0 0
        %1502 = vmatprep.subr.bf16.mxu0 0
        %1503 = vmatpush2.bf16.msra.mxu0 0
        %1504 = vmatprep.subr.bf16.mxu0 0
        %1505 = vmatpush2.bf16.msra.mxu0 0
        %1506 = vmatprep.subr.bf16.mxu0 0
        %1507 = vmatpush2.bf16.msra.mxu0 0
        %1508 = vmatprep.subr.bf16.mxu0 0
        %1509 = vmatpush2.bf16.msra.mxu0 0
        %1510 = vmatprep.mubr.bf16.mxu0 0
        %1511 = vmatmul.mubr.bf16.gmra.mxu0 %v1473
        %v1512 = vpop.f32.mrf.mxu0
        %v1513 = vadd.f32 0.0, %v1512
        %v1514 = vpop.f32.mrf.mxu0
        %v1515 = vpop.f32.mrf.mxu0
        %v1516 = vpop.f32.mrf.mxu0
        %1517 = vdwg.mxu0
        %v1519 = vsel %vm908, %v1374, 0
        %v1522 = vsel %vm1382, %v903, 0
        %1524 = vmatprep.subr.bf16.mxu0 0
        %1525 = vmatpush1.bf16.msra.mxu0 0
        %1526 = vmatprep.subr.bf16.mxu0 0
        %1527 = vmatpush1.bf16.msra.mxu0 0
        %1528 = vmatprep.subr.bf16.mxu0 0
        %1529 = vmatpush1.bf16.msra.mxu0 0
        %1530 = vmatprep.subr.bf16.mxu0 0
        %1531 = vmatpush1.bf16.msra.mxu0 0
        %1532 = vmatprep.subr.bf16.mxu0 0
        %1533 = vmatpush1.bf16.msra.mxu0 0
        %1534 = vmatprep.subr.bf16.mxu0 0
        %1535 = vmatpush1.bf16.msra.mxu0 0
        %1536 = vmatprep.subr.bf16.mxu0 0
        %1537 = vmatpush1.bf16.msra.mxu0 0
        %1538 = vmatprep.subr.bf16.mxu0 0
        %1539 = vmatpush1.bf16.msra.mxu0 %v1522
        %1540 = vmatprep.subr.bf16.mxu0 0
        %1541 = vmatpush2.bf16.msra.mxu0 0
        %1542 = vmatprep.subr.bf16.mxu0 0
        %1543 = vmatpush2.bf16.msra.mxu0 0
        %1544 = vmatprep.subr.bf16.mxu0 0
        %1545 = vmatpush2.bf16.msra.mxu0 0
        %1546 = vmatprep.subr.bf16.mxu0 0
        %1547 = vmatpush2.bf16.msra.mxu0 0
        %1548 = vmatprep.subr.bf16.mxu0 0
        %1549 = vmatpush2.bf16.msra.mxu0 0
        %1550 = vmatprep.subr.bf16.mxu0 0
        %1551 = vmatpush2.bf16.msra.mxu0 0
        %1552 = vmatprep.subr.bf16.mxu0 0
        %1553 = vmatpush2.bf16.msra.mxu0 0
        %1554 = vmatprep.subr.bf16.mxu0 0
        %1555 = vmatpush2.bf16.msra.mxu0 0
        %1556 = vmatprep.mubr.bf16.mxu0 0
        %1557 = vmatmul.mubr.bf16.gmra.mxu0 %v1519
        %v1558 = vpop.f32.mrf.mxu0
        %v1559 = vadd.f32 0.0, %v1558
        %v1560 = vpop.f32.mrf.mxu0
        %v1561 = vpop.f32.mrf.mxu0
        %v1562 = vpop.f32.mrf.mxu0
        %1563 = vdwg.mxu0
        %v1565 = vsel %vm908, %v1375, 0
        %v1568 = vsel %vm1382, %v904, 0
        %1570 = vmatprep.subr.bf16.mxu0 0
        %1571 = vmatpush1.bf16.msra.mxu0 0
        %1572 = vmatprep.subr.bf16.mxu0 0
        %1573 = vmatpush1.bf16.msra.mxu0 0
        %1574 = vmatprep.subr.bf16.mxu0 0
        %1575 = vmatpush1.bf16.msra.mxu0 0
        %1576 = vmatprep.subr.bf16.mxu0 0
        %1577 = vmatpush1.bf16.msra.mxu0 0
        %1578 = vmatprep.subr.bf16.mxu0 0
        %1579 = vmatpush1.bf16.msra.mxu0 0
        %1580 = vmatprep.subr.bf16.mxu0 0
        %1581 = vmatpush1.bf16.msra.mxu0 0
        %1582 = vmatprep.subr.bf16.mxu0 0
        %1583 = vmatpush1.bf16.msra.mxu0 0
        %1584 = vmatprep.subr.bf16.mxu0 0
        %1585 = vmatpush1.bf16.msra.mxu0 %v1568
        %1586 = vmatprep.subr.bf16.mxu0 0
        %1587 = vmatpush2.bf16.msra.mxu0 0
        %1588 = vmatprep.subr.bf16.mxu0 0
        %1589 = vmatpush2.bf16.msra.mxu0 0
        %1590 = vmatprep.subr.bf16.mxu0 0
        %1591 = vmatpush2.bf16.msra.mxu0 0
        %1592 = vmatprep.subr.bf16.mxu0 0
        %1593 = vmatpush2.bf16.msra.mxu0 0
        %1594 = vmatprep.subr.bf16.mxu0 0
        %1595 = vmatpush2.bf16.msra.mxu0 0
        %1596 = vmatprep.subr.bf16.mxu0 0
        %1597 = vmatpush2.bf16.msra.mxu0 0
        %1598 = vmatprep.subr.bf16.mxu0 0
        %1599 = vmatpush2.bf16.msra.mxu0 0
        %1600 = vmatprep.subr.bf16.mxu0 0
        %1601 = vmatpush2.bf16.msra.mxu0 0
        %1602 = vmatprep.mubr.bf16.mxu0 0
        %1603 = vmatmul.mubr.bf16.gmra.mxu0 %v1565
        %v1604 = vpop.f32.mrf.mxu0
        %v1605 = vadd.f32 0.0, %v1604
        %v1606 = vpop.f32.mrf.mxu0
        %v1607 = vpop.f32.mrf.mxu0
        %v1608 = vpop.f32.mrf.mxu0
        %1609 = vdwg.mxu0
        %v1611 = vsel %vm908, %v1376, 0
        %v1614 = vsel %vm1382, %v905, 0
        %1616 = vmatprep.subr.bf16.mxu0 0
        %1617 = vmatpush1.bf16.msra.mxu0 0
        %1618 = vmatprep.subr.bf16.mxu0 0
        %1619 = vmatpush1.bf16.msra.mxu0 0
        %1620 = vmatprep.subr.bf16.mxu0 0
        %1621 = vmatpush1.bf16.msra.mxu0 0
        %1622 = vmatprep.subr.bf16.mxu0 0
        %1623 = vmatpush1.bf16.msra.mxu0 0
        %1624 = vmatprep.subr.bf16.mxu0 0
        %1625 = vmatpush1.bf16.msra.mxu0 0
        %1626 = vmatprep.subr.bf16.mxu0 0
        %1627 = vmatpush1.bf16.msra.mxu0 0
        %1628 = vmatprep.subr.bf16.mxu0 0
        %1629 = vmatpush1.bf16.msra.mxu0 0
        %1630 = vmatprep.subr.bf16.mxu0 0
        %1631 = vmatpush1.bf16.msra.mxu0 %v1614
        %1632 = vmatprep.subr.bf16.mxu0 0
        %1633 = vmatpush2.bf16.msra.mxu0 0
        %1634 = vmatprep.subr.bf16.mxu0 0
        %1635 = vmatpush2.bf16.msra.mxu0 0
        %1636 = vmatprep.subr.bf16.mxu0 0
        %1637 = vmatpush2.bf16.msra.mxu0 0
        %1638 = vmatprep.subr.bf16.mxu0 0
        %1639 = vmatpush2.bf16.msra.mxu0 0
        %1640 = vmatprep.subr.bf16.mxu0 0
        %1641 = vmatpush2.bf16.msra.mxu0 0
        %1642 = vmatprep.subr.bf16.mxu0 0
        %1643 = vmatpush2.bf16.msra.mxu0 0
        %1644 = vmatprep.subr.bf16.mxu0 0
        %1645 = vmatpush2.bf16.msra.mxu0 0
        %1646 = vmatprep.subr.bf16.mxu0 0
        %1647 = vmatpush2.bf16.msra.mxu0 0
        %1648 = vmatprep.mubr.bf16.mxu0 0
        %1649 = vmatmul.mubr.bf16.gmra.mxu0 %v1611
        %v1650 = vpop.f32.mrf.mxu0
        %v1651 = vadd.f32 0.0, %v1650
        %v1652 = vpop.f32.mrf.mxu0
        %v1653 = vpop.f32.mrf.mxu0
        %v1654 = vpop.f32.mrf.mxu0
        %1655 = vdwg.mxu0
        %v1657 = vsel %vm908, %v1377, 0
        %v1660 = vsel %vm1382, %v906, 0
        %1662 = vmatprep.subr.bf16.mxu0 0
        %1663 = vmatpush1.bf16.msra.mxu0 0
        %1664 = vmatprep.subr.bf16.mxu0 0
        %1665 = vmatpush1.bf16.msra.mxu0 0
        %1666 = vmatprep.subr.bf16.mxu0 0
        %1667 = vmatpush1.bf16.msra.mxu0 0
        %1668 = vmatprep.subr.bf16.mxu0 0
        %1669 = vmatpush1.bf16.msra.mxu0 0
        %1670 = vmatprep.subr.bf16.mxu0 0
        %1671 = vmatpush1.bf16.msra.mxu0 0
        %1672 = vmatprep.subr.bf16.mxu0 0
        %1673 = vmatpush1.bf16.msra.mxu0 0
        %1674 = vmatprep.subr.bf16.mxu0 0
        %1675 = vmatpush1.bf16.msra.mxu0 0
        %1676 = vmatprep.subr.bf16.mxu0 0
        %1677 = vmatpush1.bf16.msra.mxu0 %v1660
        %1678 = vmatprep.subr.bf16.mxu0 0
        %1679 = vmatpush2.bf16.msra.mxu0 0
        %1680 = vmatprep.subr.bf16.mxu0 0
        %1681 = vmatpush2.bf16.msra.mxu0 0
        %1682 = vmatprep.subr.bf16.mxu0 0
        %1683 = vmatpush2.bf16.msra.mxu0 0
        %1684 = vmatprep.subr.bf16.mxu0 0
        %1685 = vmatpush2.bf16.msra.mxu0 0
        %1686 = vmatprep.subr.bf16.mxu0 0
        %1687 = vmatpush2.bf16.msra.mxu0 0
        %1688 = vmatprep.subr.bf16.mxu0 0
        %1689 = vmatpush2.bf16.msra.mxu0 0
        %1690 = vmatprep.subr.bf16.mxu0 0
        %1691 = vmatpush2.bf16.msra.mxu0 0
        %1692 = vmatprep.subr.bf16.mxu0 0
        %1693 = vmatpush2.bf16.msra.mxu0 0
        %1694 = vmatprep.mubr.bf16.mxu0 0
        %1695 = vmatmul.mubr.bf16.gmra.mxu0 %v1657
        %v1696 = vpop.f32.mrf.mxu0
        %v1697 = vadd.f32 0.0, %v1696
        %v1698 = vpop.f32.mrf.mxu0
        %v1699 = vpop.f32.mrf.mxu0
        %v1700 = vpop.f32.mrf.mxu0
        %1701 = vdwg.mxu0
        %v1703 = vsel %vm908, %v1378, 0
        %v1706 = vsel %vm1382, %v907, 0
        %1708 = vmatprep.subr.bf16.mxu0 0
        %1709 = vmatpush1.bf16.msra.mxu0 0
        %1710 = vmatprep.subr.bf16.mxu0 0
        %1711 = vmatpush1.bf16.msra.mxu0 0
        %1712 = vmatprep.subr.bf16.mxu0 0
        %1713 = vmatpush1.bf16.msra.mxu0 0
        %1714 = vmatprep.subr.bf16.mxu0 0
        %1715 = vmatpush1.bf16.msra.mxu0 0
        %1716 = vmatprep.subr.bf16.mxu0 0
        %1717 = vmatpush1.bf16.msra.mxu0 0
        %1718 = vmatprep.subr.bf16.mxu0 0
        %1719 = vmatpush1.bf16.msra.mxu0 0
        %1720 = vmatprep.subr.bf16.mxu0 0
        %1721 = vmatpush1.bf16.msra.mxu0 0
        %1722 = vmatprep.subr.bf16.mxu0 0
        %1723 = vmatpush1.bf16.msra.mxu0 %v1706
        %1724 = vmatprep.subr.bf16.mxu0 0
        %1725 = vmatpush2.bf16.msra.mxu0 0
        %1726 = vmatprep.subr.bf16.mxu0 0
        %1727 = vmatpush2.bf16.msra.mxu0 0
        %1728 = vmatprep.subr.bf16.mxu0 0
        %1729 = vmatpush2.bf16.msra.mxu0 0
        %1730 = vmatprep.subr.bf16.mxu0 0
        %1731 = vmatpush2.bf16.msra.mxu0 0
        %1732 = vmatprep.subr.bf16.mxu0 0
        %1733 = vmatpush2.bf16.msra.mxu0 0
        %1734 = vmatprep.subr.bf16.mxu0 0
        %1735 = vmatpush2.bf16.msra.mxu0 0
        %1736 = vmatprep.subr.bf16.mxu0 0
        %1737 = vmatpush2.bf16.msra.mxu0 0
        %1738 = vmatprep.subr.bf16.mxu0 0
        %1739 = vmatpush2.bf16.msra.mxu0 0
        %1740 = vmatprep.mubr.bf16.mxu0 0
        %1741 = vmatmul.mubr.bf16.gmra.mxu0 %v1703
        %v1742 = vpop.f32.mrf.mxu0
        %v1743 = vadd.f32 0.0, %v1742
        %v1744 = vpop.f32.mrf.mxu0
        %v1745 = vpop.f32.mrf.mxu0
        %v1746 = vpop.f32.mrf.mxu0
        %1747 = vdwg.mxu0
        %v1748 = vrcp.pop %v1349
        %v1749 = vrcp.pop %v1352
        %v1750 = vrcp.pop %v1355
        %v1751 = vrcp.pop %v1358
        %v1752 = vrcp.pop %v1361
        %v1753 = vrcp.pop %v1364
        %v1754 = vrcp.pop %v1367
        %v1755 = vrcp.pop %v1370
        %v1756 = vmul.f32 %v1421, %v1748
        %v1757 = vmul.f32 %v1467, %v1749
        %v1758 = vmul.f32 %v1513, %v1750
        %v1759 = vmul.f32 %v1559, %v1751
        %v1760 = vmul.f32 %v1605, %v1752
        %v1761 = vmul.f32 %v1651, %v1753
        %v1762 = vmul.f32 %v1697, %v1754
        %v1763 = vmul.f32 %v1743, %v1755
        %1766 = vrot.lane.b32.xlu0 %v1758, 8
        %v1767 = vpop.permute.xlu0 %1766
        %1768 = vrot.lane.b32.xlu0 %v1759, 8
        %v1769 = vpop.permute.xlu0 %1768
        %1774 = vrot.lane.b32.xlu0 %v1760, 16
        %v1775 = vpop.permute.xlu0 %1774
        %1776 = vrot.lane.b32.xlu0 %v1761, 16
        %v1777 = vpop.permute.xlu0 %1776
        %1782 = vrot.lane.b32.xlu0 %v1762, 24
        %v1783 = vpop.permute.xlu0 %1782
        %1784 = vrot.lane.b32.xlu0 %v1763, 24
        %v1785 = vpop.permute.xlu0 %1784
        %v1788 = vsel %vm908, %v1756, %v1767
        %v1789 = vsel %vm908, %v1757, %v1769
        %vm1790 = vcmask 130048
        %v1791 = vsel %vm1790, %v1788, %v1775
        %v1792 = vsel %vm1790, %v1789, %v1777
        %vm1793 = vcmask 195584
        %v1794 = vsel %vm1793, %v1791, %v1783
        %v1795 = vsel %vm1793, %v1792, %v1785
        %v1796 = vpack.c.bf16 %v1795, %v1794
        %v1797 = vld [vmem:[%s658] sm:$0xf]
        %v1798 = vld [vmem:[%s658 + $0x4] sm:$0xf]
        %v1799 = vld [vmem:[%s658 + $0x8] sm:$0xf]
        %v1800 = vld [vmem:[%s658 + $0xc] sm:$0xf]
        %v1801 = vld [vmem:[%s661] sm:$0x1]
        %v1803 = vlaneseq
        %v1804 = vshrl.u32 %v1803, 7
        %v1805 = vsub.s32 0, %v1804
        %v1806 = vrot.slane %v1801, %v1805
        %v1812 = vunpack.c.l.b16 %v1797
        %v1813 = vunpack.c.l.b16 %v1798
        %v1814 = vunpack.c.l.b16 %v1799
        %v1815 = vunpack.c.l.b16 %v1800
        %v1816 = vpack.c.b16 %v1813, %v1812
        %v1817 = vpack.c.b16 %v1815, %v1814
        %v1821 = vsel %vm720, %v1796, 0
        %1823 = vmatprep.subr.bf16.mxu0 0
        %1824 = vmatpush1.bf16.msra.mxu0 0
        %1825 = vmatprep.subr.bf16.mxu0 0
        %1826 = vmatpush1.bf16.msra.mxu0 0
        %1827 = vmatprep.subr.bf16.mxu0 0
        %1828 = vmatpush1.bf16.msra.mxu0 0
        %1829 = vmatprep.subr.bf16.mxu0 0
        %1830 = vmatpush1.bf16.msra.mxu0 0
        %1831 = vmatprep.subr.bf16.mxu0 0
        %1832 = vmatpush1.bf16.msra.mxu0 0
        %1833 = vmatprep.subr.bf16.mxu0 0
        %1834 = vmatpush1.bf16.msra.mxu0 0
        %1835 = vmatprep.subr.bf16.mxu0 0
        %1836 = vmatpush1.bf16.msra.mxu0 %v1817
        %1837 = vmatprep.subr.bf16.mxu0 0
        %1838 = vmatpush1.bf16.msra.mxu0 %v1816
        %1839 = vmatprep.subr.bf16.mxu0 0
        %1840 = vmatpush2.bf16.msra.mxu0 0
        %1841 = vmatprep.subr.bf16.mxu0 0
        %1842 = vmatpush2.bf16.msra.mxu0 0
        %1843 = vmatprep.subr.bf16.mxu0 0
        %1844 = vmatpush2.bf16.msra.mxu0 0
        %1845 = vmatprep.subr.bf16.mxu0 0
        %1846 = vmatpush2.bf16.msra.mxu0 0
        %1847 = vmatprep.subr.bf16.mxu0 0
        %1848 = vmatpush2.bf16.msra.mxu0 0
        %1849 = vmatprep.subr.bf16.mxu0 0
        %1850 = vmatpush2.bf16.msra.mxu0 0
        %1851 = vmatprep.subr.bf16.mxu0 0
        %1852 = vmatpush2.bf16.msra.mxu0 0
        %1853 = vmatprep.subr.bf16.mxu0 0
        %1854 = vmatpush2.bf16.msra.mxu0 0
        %1855 = vmatprep.mubr.bf16.mxu0 0
        %1856 = vmatmul.mubr.bf16.gmra.mxu0 %v1821
        %v1857 = vpop.f32.mrf.mxu0
        %v1858 = vadd.f32 %v1806, %v1857
        %v1859 = vpop.f32.mrf.mxu0
        %v1860 = vpop.f32.mrf.mxu0
        %v1861 = vadd.f32 %v1806, %v1860
        %v1862 = vpop.f32.mrf.mxu0
        %1863 = vdwg.mxu0
        %v1864 = vadd.f32 %v1858, %v701
        %v1865 = vadd.f32 %v1861, %v702
        %v1866 = vld [vmem:[%s664] sm:$0x1]
        %v1867 = vld [vmem:[%s667] sm:$0x1]
        %v1868 = vsel %vm720, %v1864, 0.0
        %1869 = vadd.xlane.f32.xlu0 %v1868
        %v1870 = vpop.xlane.xlu0 %1869
        %v1871 = vsel %vm720, %v1865, 0.0
        %1872 = vadd.xlane.f32.xlu0 %v1871
        %v1873 = vpop.xlane.xlu0 %1872
        %v1874 = vrcp.pop 32.0
        %v1875 = vmul.f32 %v1870, %v1874
        %v1876 = vmul.f32 %v1873, %v1874
        %v1877 = vsub.f32 %v1864, %v1875
        %v1878 = vsub.f32 %v1865, %v1876
        %v1879 = vmul.f32 %v1877, %v1877
        %v1880 = vmul.f32 %v1878, %v1878
        %v1881 = vsel %vm720, %v1879, 0.0
        %1882 = vadd.xlane.f32.xlu0 %v1881
        %v1883 = vpop.xlane.xlu0 %1882
        %v1884 = vsel %vm720, %v1880, 0.0
        %1885 = vadd.xlane.f32.xlu0 %v1884
        %v1886 = vpop.xlane.xlu0 %1885
        %v1887 = vmul.f32 %v1883, %v1874
        %v1888 = vmul.f32 %v1886, %v1874
        %v1889 = vadd.f32 %v1887, 1e-05
        %v1890 = vadd.f32 %v1888, 1e-05
        %v1891 = vrsqrt.pop %v1889
        %v1892 = vrsqrt.pop %v1890
        %v1893 = vmul.f32 %v1877, %v1891
        %v1894 = vmul.f32 %v1878, %v1892
        %v1896 = vlaneseq
        %v1897 = vshrl.u32 %v1896, 7
        %v1898 = vsub.s32 0, %v1897
        %v1899 = vrot.slane %v1866, %v1898
        %v1901 = vmul.f32 %v1893, %v1899
        %v1902 = vmul.f32 %v1894, %v1899
        %v1904 = vlaneseq
        %v1905 = vshrl.u32 %v1904, 7
        %v1906 = vsub.s32 0, %v1905
        %v1907 = vrot.slane %v1867, %v1906
        %v1909 = vadd.f32 %v1901, %v1907
        %v1910 = vadd.f32 %v1902, %v1907
        %v1911 = vpack.c.bf16 %v1910, %v1909
        %v1912 = vld [vmem:[%s672] sm:$0xf]
        %v1913 = vld [vmem:[%s672 + $0x4] sm:$0xf]
        %v1914 = vld [vmem:[%s672 + $0x8] sm:$0xf]
        %v1915 = vld [vmem:[%s672 + $0xc] sm:$0xf]
        %v1916 = vld [vmem:[%s675] sm:$0x1]
        %v1918 = vlaneseq
        %v1919 = vshrl.u32 %v1918, 7
        %v1920 = vsub.s32 0, %v1919
        %v1921 = vrot.slane %v1916, %v1920
        %v1927 = vunpack.c.l.b16 %v1912
        %v1928 = vunpack.c.l.b16 %v1913
        %v1929 = vunpack.c.l.b16 %v1914
        %v1930 = vunpack.c.l.b16 %v1915
        %v1931 = vpack.c.b16 %v1928, %v1927
        %v1932 = vpack.c.b16 %v1930, %v1929
        %v1936 = vsel %vm720, %v1911, 0
        %1938 = vmatprep.subr.bf16.mxu0 0
        %1939 = vmatpush1.bf16.msra.mxu0 0
        %1940 = vmatprep.subr.bf16.mxu0 0
        %1941 = vmatpush1.bf16.msra.mxu0 0
        %1942 = vmatprep.subr.bf16.mxu0 0
        %1943 = vmatpush1.bf16.msra.mxu0 0
        %1944 = vmatprep.subr.bf16.mxu0 0
        %1945 = vmatpush1.bf16.msra.mxu0 0
        %1946 = vmatprep.subr.bf16.mxu0 0
        %1947 = vmatpush1.bf16.msra.mxu0 0
        %1948 = vmatprep.subr.bf16.mxu0 0
        %1949 = vmatpush1.bf16.msra.mxu0 0
        %1950 = vmatprep.subr.bf16.mxu0 0
        %1951 = vmatpush1.bf16.msra.mxu0 %v1932
        %1952 = vmatprep.subr.bf16.mxu0 0
        %1953 = vmatpush1.bf16.msra.mxu0 %v1931
        %1954 = vmatprep.subr.bf16.mxu0 0
        %1955 = vmatpush2.bf16.msra.mxu0 0
        %1956 = vmatprep.subr.bf16.mxu0 0
        %1957 = vmatpush2.bf16.msra.mxu0 0
        %1958 = vmatprep.subr.bf16.mxu0 0
        %1959 = vmatpush2.bf16.msra.mxu0 0
        %1960 = vmatprep.subr.bf16.mxu0 0
        %1961 = vmatpush2.bf16.msra.mxu0 0
        %1962 = vmatprep.subr.bf16.mxu0 0
        %1963 = vmatpush2.bf16.msra.mxu0 0
        %1964 = vmatprep.subr.bf16.mxu0 0
        %1965 = vmatpush2.bf16.msra.mxu0 0
        %1966 = vmatprep.subr.bf16.mxu0 0
        %1967 = vmatpush2.bf16.msra.mxu0 0
        %1968 = vmatprep.subr.bf16.mxu0 0
        %1969 = vmatpush2.bf16.msra.mxu0 0
        %1970 = vmatprep.mubr.bf16.mxu0 0
        %1971 = vmatmul.mubr.bf16.gmra.mxu0 %v1936
        %v1972 = vpop.f32.mrf.mxu0
        %v1973 = vadd.f32 %v1921, %v1972
        %v1974 = vpop.f32.mrf.mxu0
        %v1975 = vpop.f32.mrf.mxu0
        %v1976 = vadd.f32 %v1921, %v1975
        %v1977 = vpop.f32.mrf.mxu0
        %1978 = vdwg.mxu0
        %v1979 = vmax.f32 %v1973, 0.0
        %v1980 = vmax.f32 %v1976, 0.0
        %v1981 = vpack.c.bf16 %v1980, %v1979
        %v1982 = vld [vmem:[%s680] sm:$0xf]
        %v1983 = vld [vmem:[%s680 + $0x4] sm:$0xf]
        %v1984 = vld [vmem:[%s680 + $0x8] sm:$0xf]
        %v1985 = vld [vmem:[%s680 + $0xc] sm:$0xf]
        %v1986 = vld [vmem:[%s680 + $0x10] sm:$0xf]
        %v1987 = vld [vmem:[%s680 + $0x14] sm:$0xf]
        %v1988 = vld [vmem:[%s680 + $0x18] sm:$0xf]
        %v1989 = vld [vmem:[%s680 + $0x1c] sm:$0xf]
        %v1990 = vld [vmem:[%s680 + $0x20] sm:$0xf]
        %v1991 = vld [vmem:[%s680 + $0x24] sm:$0xf]
        %v1992 = vld [vmem:[%s680 + $0x28] sm:$0xf]
        %v1993 = vld [vmem:[%s680 + $0x2c] sm:$0xf]
        %v1994 = vld [vmem:[%s680 + $0x30] sm:$0xf]
        %v1995 = vld [vmem:[%s680 + $0x34] sm:$0xf]
        %v1996 = vld [vmem:[%s680 + $0x38] sm:$0xf]
        %v1997 = vld [vmem:[%s680 + $0x3c] sm:$0xf]
        %v1998 = vld [vmem:[%s683] sm:$0x1]
        %v2000 = vlaneseq
        %v2001 = vshrl.u32 %v2000, 7
        %v2002 = vsub.s32 0, %v2001
        %v2003 = vrot.slane %v1998, %v2002
        %v2021 = vunpack.c.l.b16 %v1982
        %v2022 = vunpack.c.l.b16 %v1983
        %v2023 = vunpack.c.l.b16 %v1984
        %v2024 = vunpack.c.l.b16 %v1985
        %v2025 = vunpack.c.l.b16 %v1986
        %v2026 = vunpack.c.l.b16 %v1987
        %v2027 = vunpack.c.l.b16 %v1988
        %v2028 = vunpack.c.l.b16 %v1989
        %v2029 = vunpack.c.l.b16 %v1990
        %v2030 = vunpack.c.l.b16 %v1991
        %v2031 = vunpack.c.l.b16 %v1992
        %v2032 = vunpack.c.l.b16 %v1993
        %v2033 = vunpack.c.l.b16 %v1994
        %v2034 = vunpack.c.l.b16 %v1995
        %v2035 = vunpack.c.l.b16 %v1996
        %v2036 = vunpack.c.l.b16 %v1997
        %v2037 = vpack.c.b16 %v2022, %v2021
        %v2038 = vpack.c.b16 %v2024, %v2023
        %v2039 = vpack.c.b16 %v2026, %v2025
        %v2040 = vpack.c.b16 %v2028, %v2027
        %v2041 = vpack.c.b16 %v2030, %v2029
        %v2042 = vpack.c.b16 %v2032, %v2031
        %v2043 = vpack.c.b16 %v2034, %v2033
        %v2044 = vpack.c.b16 %v2036, %v2035
        %2053 = vmatprep.subr.bf16.mxu0 0
        %2054 = vmatpush1.bf16.msra.mxu0 %v2044
        %2055 = vmatprep.subr.bf16.mxu0 0
        %2056 = vmatpush1.bf16.msra.mxu0 %v2043
        %2057 = vmatprep.subr.bf16.mxu0 0
        %2058 = vmatpush1.bf16.msra.mxu0 %v2042
        %2059 = vmatprep.subr.bf16.mxu0 0
        %2060 = vmatpush1.bf16.msra.mxu0 %v2041
        %2061 = vmatprep.subr.bf16.mxu0 0
        %2062 = vmatpush1.bf16.msra.mxu0 %v2040
        %2063 = vmatprep.subr.bf16.mxu0 0
        %2064 = vmatpush1.bf16.msra.mxu0 %v2039
        %2065 = vmatprep.subr.bf16.mxu0 0
        %2066 = vmatpush1.bf16.msra.mxu0 %v2038
        %2067 = vmatprep.subr.bf16.mxu0 0
        %2068 = vmatpush1.bf16.msra.mxu0 %v2037
        %2069 = vmatprep.subr.bf16.mxu0 0
        %2070 = vmatpush2.bf16.msra.mxu0 0
        %2071 = vmatprep.subr.bf16.mxu0 0
        %2072 = vmatpush2.bf16.msra.mxu0 0
        %2073 = vmatprep.subr.bf16.mxu0 0
        %2074 = vmatpush2.bf16.msra.mxu0 0
        %2075 = vmatprep.subr.bf16.mxu0 0
        %2076 = vmatpush2.bf16.msra.mxu0 0
        %2077 = vmatprep.subr.bf16.mxu0 0
        %2078 = vmatpush2.bf16.msra.mxu0 0
        %2079 = vmatprep.subr.bf16.mxu0 0
        %2080 = vmatpush2.bf16.msra.mxu0 0
        %2081 = vmatprep.subr.bf16.mxu0 0
        %2082 = vmatpush2.bf16.msra.mxu0 0
        %2083 = vmatprep.subr.bf16.mxu0 0
        %2084 = vmatpush2.bf16.msra.mxu0 0
        %2085 = vmatprep.mubr.bf16.mxu0 0
        %2086 = vmatmul.mubr.bf16.gmra.mxu0 %v1981
        %v2087 = vpop.f32.mrf.mxu0
        %v2088 = vadd.f32 %v2003, %v2087
        %v2089 = vpop.f32.mrf.mxu0
        %v2090 = vpop.f32.mrf.mxu0
        %v2091 = vadd.f32 %v2003, %v2090
        %v2092 = vpop.f32.mrf.mxu0
        %2093 = vdwg.mxu0
        %v2094 = vadd.f32 %v2088, %v1909
        %v2095 = vadd.f32 %v2091, %v1910
        %v2096 = vld [vmem:[%s686] sm:$0x1]
        %v2097 = vld [vmem:[%s689] sm:$0x1]
        %v2098 = vsel %vm720, %v2094, 0.0
        %2099 = vadd.xlane.f32.xlu0 %v2098
        %v2100 = vpop.xlane.xlu0 %2099
        %v2101 = vsel %vm720, %v2095, 0.0
        %2102 = vadd.xlane.f32.xlu0 %v2101
        %v2103 = vpop.xlane.xlu0 %2102
        %v2104 = vmul.f32 %v2100, %v1874
        %v2105 = vmul.f32 %v2103, %v1874
        %v2106 = vsub.f32 %v2094, %v2104
        %v2107 = vsub.f32 %v2095, %v2105
        %v2108 = vmul.f32 %v2106, %v2106
        %v2109 = vmul.f32 %v2107, %v2107
        %v2110 = vsel %vm720, %v2108, 0.0
        %2111 = vadd.xlane.f32.xlu0 %v2110
        %v2112 = vpop.xlane.xlu0 %2111
        %v2113 = vsel %vm720, %v2109, 0.0
        %2114 = vadd.xlane.f32.xlu0 %v2113
        %v2115 = vpop.xlane.xlu0 %2114
        %v2116 = vmul.f32 %v2112, %v1874
        %v2117 = vmul.f32 %v2115, %v1874
        %v2118 = vadd.f32 %v2116, 1e-05
        %v2119 = vadd.f32 %v2117, 1e-05
        %v2120 = vrsqrt.pop %v2118
        %v2121 = vrsqrt.pop %v2119
        %v2122 = vmul.f32 %v2106, %v2120
        %v2123 = vmul.f32 %v2107, %v2121
        %v2125 = vlaneseq
        %v2126 = vshrl.u32 %v2125, 7
        %v2127 = vsub.s32 0, %v2126
        %v2128 = vrot.slane %v2096, %v2127
        %v2130 = vmul.f32 %v2122, %v2128
        %v2131 = vmul.f32 %v2123, %v2128
        %v2133 = vlaneseq
        %v2134 = vshrl.u32 %v2133, 7
        %v2135 = vsub.s32 0, %v2134
        %v2136 = vrot.slane %v2097, %v2135
        %v2138 = vadd.f32 %v2130, %v2136
        %v2139 = vadd.f32 %v2131, %v2136
        %2140 = vst.msk [vmem:[#allocation2] sm:$0xff] %vm720, %v2138
        %2141 = vst.msk [vmem:[#allocation2 + $0x8] sm:$0xff] %vm720, %v2139
        %p2142 = scmp.eq.s32.totalorder %s31, 1
        // Predicated region
        $region81: #{tpu_custom_call.1} parent=75 // pred_check
          %p2143 = pneg %p2142
        $region82: #{tpu_custom_call.1} parent=75 // pred_check_branch
          %2145 = sbr.rel (%p2143) target = $region84
        $region83: #{tpu_custom_call.1} parent=75 // pred_region
          %2146 = vst.msk [vmem:[#allocation3] sm:$0xff] %vm720, %v2138
          %2147 = vst.msk [vmem:[#allocation3 + $0x8] sm:$0xff] %vm720, %v2139
        $region84: #{tpu_custom_call.1} parent=75 // pred_fallthru
          _
        // Predicated region
        $region85: #{tpu_custom_call.1} parent=75 // pred_check
          %p2148 = pneg %p420
        $region86: #{tpu_custom_call.1} parent=75 // pred_check_branch
          %2150 = sbr.rel (%p2148) target = $region88
        $region87: #{tpu_custom_call.1} parent=75 // pred_region
          %s2151 = smul.u32 2, %s30
          %s2153 = ssub.s32 256, 256
          %2154 = vsyncadd [#allocation4], %s2153
          %s2155 = smul.addr %s2151, 128
          %s2156 = scalar_lea.hbm %s14, %s2155
          %s2157 = sshll.u32 [#allocation3], 4
          %s2158 = int_to_ptr.vmem [resolvable:$true] %s2157
          %2163 = dma.vmem_to_hbm [thread:$0]  %s2158, 256, %s2156, [#allocation4], 128, 128, 8
        $region88: #{tpu_custom_call.1} parent=75 // pred_fallthru
          _
        // Predicated region
        $region89: #{tpu_custom_call.1} parent=75 // pred_check
          %p2164 = pneg %p420
        $region90: #{tpu_custom_call.1} parent=75 // pred_check_branch
          %2166 = sbr.rel (%p2164) target = $region92
        $region91: #{tpu_custom_call.1} parent=75 // pred_region
          %2167 = dma.done [#allocation4], 256
        $region92: #{tpu_custom_call.1} parent=75 // pred_fallthru
          _
      $region76: #{tpu_custom_call.1} parent=5 // pred_fallthru
        _
      %p2168 = scmp.le.s32.totalorder 2, %s21
      // Predicated region
      $region93: #{tpu_custom_call.1} parent=5 // pred_check
        %p2169 = pneg %p2168
      $region94: #{tpu_custom_call.1} parent=5 // pred_check_branch
        %2171 = sbr.rel (%p2169) target = $region96
      $region95: #{tpu_custom_call.1} parent=5 // pred_region
        %s2172 = ssub.s32 %s21, 2
      $region96: #{tpu_custom_call.1} parent=5 // pred_fallthru
        _
    $region6: #{tpu_custom_call.1} parent=1 // loop_footer
      %s25 = sadd.s32 1, %s21
    $region7: #{tpu_custom_call.1} parent=1 // loop_footer_branch
      %20 = sbr.rel target = $region3
    $region8: #{tpu_custom_call.1} parent=1 // loop_exit
      _
    %2173 = vsyncpa [#allocation4], 1
    %s2174 = scalar_lea.sflag [#allocation4], 1
    %2175 = vsyncpa %s2174, 1

</llo_original>
